<compile_context>
chip_gen: v5e
topology: v5e:2x2
jax: 0.10.0
libtpu: 0.0.40
codegen_flags: <defaults>
</compile_context>

<pallas_src>
import jax
import jax.numpy as jnp
from jax.experimental import pallas as pl
from jax.experimental.pallas import tpu as pltpu


def _fused_kernel(s_ref, x_ref, w_ref, g_ref, b_ref, o_ref):
    # s_ref : (Cin, 1)  f32   pre-sigmoid SE gate
    # x_ref : (Cin, M)  f32   input slab (resident across the Cout grid)
    # w_ref : (TN, Cin) bf16  1x1-conv weight tile (rows = output channels)
    # g_ref : (TN, 1)   f32   BN gamma tile
    # b_ref : (TN, 1)   f32   BN beta  tile
    # o_ref : (TN, M)   f32   output tile
    inv_m = 1.0 / x_ref.shape[1]

    # Gate + bf16 cast feeding the MXU.  Recomputed per Cout tile: ~Cin*M VPU
    # ops, hidden under the tn*M*Cin MACs of the matmul, and avoids any
    # cross-tile scratch dependency (grid axis stays megacore-parallel).
    xb = (x_ref[...] * jax.nn.sigmoid(s_ref[...])).astype(jnp.bfloat16)

    # 1x1 conv == matmul on the MXU, f32 accumulation.
    y = jnp.dot(w_ref[...], xb, preferred_element_type=jnp.float32)   # (TN, M)

    # One-pass batch statistics per output channel (exact: full M per tile).
    s1 = jnp.sum(y, axis=1, keepdims=True)
    s2 = jnp.sum(y * y, axis=1, keepdims=True)
    mean = s1 * inv_m
    var = jnp.maximum(s2 * inv_m - mean * mean, 0.0)   # biased variance
    inv = jax.lax.rsqrt(var + 1e-5)

    # Fold BN into a single scale+bias per element.
    a = inv * g_ref[...]
    c = b_ref[...] - mean * a
    o_ref[...] = (y * a + c).astype(o_ref.dtype)


def sigmoid_mul_conv_bn(x_nchw, gate_nc11, conv_w, gamma, beta, *, tn=128):
    """x_nchw: (N,C,H,W); gate_nc11: (1,C,1,1); conv_w: (Cout,Cin,1,1)."""
    N, C, H, W = x_nchw.shape
    Cout = conv_w.shape[0]
    M = N * H * W
    tn = min(tn, Cout)
    n_tiles = pl.cdiv(Cout, tn)

    # Channels-first 2-D slabs.  For N == 1 these transposes move only a
    # size-1 axis -> free reshapes (no HBM pass), unlike the old NHWC round-trip.
    x2d = jnp.transpose(x_nchw, (1, 0, 2, 3)).reshape(C, M)          # (Cin, M)
    s2d = gate_nc11.reshape(C, 1)                                    # (Cin, 1)
    w2d = conv_w[:, :, 0, 0].astype(jnp.bfloat16)                    # (Cout, Cin)
    g2d = gamma.reshape(Cout, 1).astype(jnp.float32)
    b2d = beta.reshape(Cout, 1).astype(jnp.float32)

    flops = 2 * M * C * Cout + 8 * M * Cout
    bytes_accessed = (x2d.size * 4 + w2d.size * 2 + Cout * M * 4
                      + s2d.size * 4 + g2d.size * 4 + b2d.size * 4)

    out2d = pl.pallas_call(
        _fused_kernel,
        out_shape=jax.ShapeDtypeStruct((Cout, M), x_nchw.dtype),
        grid=(n_tiles,),
        in_specs=[
            pl.BlockSpec((C, 1), lambda j: (0, 0)),    # gate, resident
            pl.BlockSpec((C, M), lambda j: (0, 0)),    # x slab, resident
            pl.BlockSpec((tn, C), lambda j: (j, 0)),   # streamed weight tile
            pl.BlockSpec((tn, 1), lambda j: (j, 0)),   # gamma tile
            pl.BlockSpec((tn, 1), lambda j: (j, 0)),   # beta tile
        ],
        out_specs=pl.BlockSpec((tn, M), lambda j: (j, 0)),
        compiler_params=pltpu.CompilerParams(
            dimension_semantics=("parallel",),          # megacore on v7x
            vmem_limit_bytes=32 * 1024 * 1024,
        ),
        cost_estimate=pl.CostEstimate(
            flops=flops,
            transcendentals=C * n_tiles + Cout,
            bytes_accessed=bytes_accessed,
        ),
    )(s2d, x2d, w2d, g2d, b2d)

    # (Cout, M) -> (N, Cout, H, W); free for N == 1.
    return jnp.transpose(out2d.reshape(Cout, N, H, W), (1, 0, 2, 3))


if __name__ == "__main__":
    # Small shapes consistent with the module (original: N=1, C=1392, H=W=14).
    N, C, H, W = 1, 256, 8, 8
    key = jax.random.PRNGKey(0)
    k1, k2, k3 = jax.random.split(key, 3)

    x175 = jax.random.normal(k1, (N, C, H, W), dtype=jnp.float32)    # feature map
    x179 = jax.random.normal(k2, (1, C, 1, 1), dtype=jnp.float32)    # SE gate input

    # Conv2d(C->C, 1x1, bias=False) analogue — deterministic init.
    conv_w = (jax.random.normal(k3, (C, C, 1, 1), dtype=jnp.float32)
              * (1.0 / jnp.sqrt(C)))
    # BatchNorm2d affine params at init: gamma=1, beta=0.
    gamma = jnp.ones((C,), dtype=jnp.float32)
    beta = jnp.zeros((C,), dtype=jnp.float32)

    out = sigmoid_mul_conv_bn(x175, x179, conv_w, gamma, beta, tn=128)
    out = jax.block_until_ready(out)

    # Pure f32 reference of the same math (training-mode BN, biased variance).
    M = N * H * W
    x2 = jnp.transpose(x175, (1, 0, 2, 3)).reshape(C, M)
    xs = x2 * jax.nn.sigmoid(x179.reshape(C, 1))
    y = conv_w[:, :, 0, 0] @ xs
    mean = jnp.mean(y, axis=1, keepdims=True)
    var = jnp.mean((y - mean) ** 2, axis=1, keepdims=True)
    ref2d = ((y - mean) * jax.lax.rsqrt(var + 1e-5) * gamma[:, None]
             + beta[:, None])
    ref = jnp.transpose(ref2d.reshape(C, N, H, W), (1, 0, 2, 3))

    # bf16 weight/activation on the MXU (f32 accumulation) -> relaxed tolerance.
    err = float(jnp.max(jnp.abs(out - ref)))
    assert jnp.allclose(out, ref, atol=5e-2, rtol=5e-2), f"max abs err {err}"
    print("KERNEL_OK")
</pallas_src>

<mosaic_0001>
module attributes {stable_mosaic.version = 11 : i64} {
  func.func @_fused_kernel(%arg0: i32, %arg1: memref<256x1xf32, #tpu.memory_space<vmem>>, %arg2: memref<256x64xf32, #tpu.memory_space<vmem>>, %arg3: memref<128x256xbf16, #tpu.memory_space<vmem>>, %arg4: memref<128x1xf32, #tpu.memory_space<vmem>>, %arg5: memref<128x1xf32, #tpu.memory_space<vmem>>, %arg6: memref<128x64xf32, #tpu.memory_space<vmem>>) attributes {dimension_semantics = [#tpu.dimension_semantics<parallel>], iteration_bounds = array<i64: 2>, scalar_prefetch = 0 : i64, scratch_operands = 0 : i64, tpu.core_type = #tpu.core_type<tc>, window_params = [{pipeline_mode = #tpu.pipeline_mode<synchronous>, transform_indices = @transform_0, window_bounds = array<i64: 256, 1>}, {pipeline_mode = #tpu.pipeline_mode<synchronous>, transform_indices = @transform_1, window_bounds = array<i64: 256, 64>}, {transform_indices = @transform_2, window_bounds = array<i64: 128, 256>}, {transform_indices = @transform_3, window_bounds = array<i64: 128, 1>}, {transform_indices = @transform_4, window_bounds = array<i64: 128, 1>}, {transform_indices = @transform_5, window_bounds = array<i64: 128, 64>}]} {
    %c0 = arith.constant 0 : index
    %c0_0 = arith.constant 0 : index
    %0 = vector.load %arg2[%c0, %c0_0] : memref<256x64xf32, #tpu.memory_space<vmem>>, vector<256x64xf32>
    %c0_1 = arith.constant 0 : index
    %c0_2 = arith.constant 0 : index
    %1 = vector.load %arg1[%c0_1, %c0_2] : memref<256x1xf32, #tpu.memory_space<vmem>>, vector<256x1xf32>
    %2 = arith.negf %1 : vector<256x1xf32>
    %3 = math.exp %2 : vector<256x1xf32>
    %cst = arith.constant 1.000000e+00 : f32
    %4 = vector.broadcast %cst : f32 to vector<256x1xf32>
    %5 = arith.addf %4, %3 : vector<256x1xf32>
    %6 = arith.divf %4, %5 : vector<256x1xf32>
    %7 = vector.broadcast %6 : vector<256x1xf32> to vector<256x64xf32>
    %8 = arith.mulf %0, %7 : vector<256x64xf32>
    %9 = arith.truncf %8 : vector<256x64xf32> to vector<256x64xbf16>
    %c0_3 = arith.constant 0 : index
    %c0_4 = arith.constant 0 : index
    %10 = vector.load %arg3[%c0_3, %c0_4] : memref<128x256xbf16, #tpu.memory_space<vmem>>, vector<128x256xbf16>
    %cst_5 = arith.constant dense<0.000000e+00> : vector<128x64xf32>
    %11 = tpu.matmul %10, %9, %cst_5 {dimension_numbers = #tpu.dot_dimension_numbers<[1], [0], [0], [1], [0, 0, 1, 1], [], []>} : vector<128x256xbf16>, vector<256x64xbf16>, vector<128x64xf32> -> vector<128x64xf32>
    %cst_6 = arith.constant dense<0.000000e+00> : vector<128xf32>
    %12 = vector.multi_reduction <add>, %11, %cst_6 [1] : vector<128x64xf32> to vector<128xf32>
    %13 = vector.shape_cast %12 : vector<128xf32> to vector<128x1xf32>
    %14 = arith.mulf %11, %11 : vector<128x64xf32>
    %cst_7 = arith.constant dense<0.000000e+00> : vector<128xf32>
    %15 = vector.multi_reduction <add>, %14, %cst_7 [1] : vector<128x64xf32> to vector<128xf32>
    %16 = vector.shape_cast %15 : vector<128xf32> to vector<128x1xf32>
    %cst_8 = arith.constant 1.562500e-02 : f32
    %17 = vector.broadcast %cst_8 : f32 to vector<128x1xf32>
    %18 = arith.mulf %13, %17 : vector<128x1xf32>
    %cst_9 = arith.constant 1.562500e-02 : f32
    %19 = vector.broadcast %cst_9 : f32 to vector<128x1xf32>
    %20 = arith.mulf %16, %19 : vector<128x1xf32>
    %21 = arith.mulf %18, %18 : vector<128x1xf32>
    %22 = arith.subf %20, %21 : vector<128x1xf32>
    %cst_10 = arith.constant 0.000000e+00 : f32
    %23 = vector.broadcast %cst_10 : f32 to vector<128x1xf32>
    %24 = arith.maximumf %22, %23 : vector<128x1xf32>
    %cst_11 = arith.constant 9.99999974E-6 : f32
    %25 = vector.broadcast %cst_11 : f32 to vector<128x1xf32>
    %26 = arith.addf %24, %25 : vector<128x1xf32>
    %27 = math.rsqrt %26 : vector<128x1xf32>
    %c0_12 = arith.constant 0 : index
    %c0_13 = arith.constant 0 : index
    %28 = vector.load %arg4[%c0_12, %c0_13] : memref<128x1xf32, #tpu.memory_space<vmem>>, vector<128x1xf32>
    %29 = arith.mulf %27, %28 : vector<128x1xf32>
    %c0_14 = arith.constant 0 : index
    %c0_15 = arith.constant 0 : index
    %30 = vector.load %arg5[%c0_14, %c0_15] : memref<128x1xf32, #tpu.memory_space<vmem>>, vector<128x1xf32>
    %31 = arith.mulf %18, %29 : vector<128x1xf32>
    %32 = arith.subf %30, %31 : vector<128x1xf32>
    %33 = vector.broadcast %29 : vector<128x1xf32> to vector<128x64xf32>
    %34 = arith.mulf %11, %33 : vector<128x64xf32>
    %35 = vector.broadcast %32 : vector<128x1xf32> to vector<128x64xf32>
    %36 = arith.addf %34, %35 : vector<128x64xf32>
    %c0_16 = arith.constant 0 : index
    %c0_17 = arith.constant 0 : index
    %37 = vector.load %arg6[%c0_16, %c0_17] : memref<128x64xf32, #tpu.memory_space<vmem>>, vector<128x64xf32>
    tpu.vector_store %arg6[%c0_16, %c0_17], %36 {strides = array<i32>} : memref<128x64xf32, #tpu.memory_space<vmem>>, vector<128x64xf32>,
    return
  }
  func.func @transform_0(%arg0: i32) -> (i32, i32) {
    %c0_i32 = arith.constant 0 : i32
    %c0_i32_0 = arith.constant 0 : i32
    %c0_i32_1 = arith.constant 0 : i32
    return %c0_i32, %c0_i32_0 : i32, i32
  }
  func.func @transform_1(%arg0: i32) -> (i32, i32) {
    %c0_i32 = arith.constant 0 : i32
    %c0_i32_0 = arith.constant 0 : i32
    %c0_i32_1 = arith.constant 0 : i32
    return %c0_i32, %c0_i32_0 : i32, i32
  }
  func.func @transform_2(%arg0: i32) -> (i32, i32) {
    %c0_i32 = arith.constant 0 : i32
    %c0_i32_0 = arith.constant 0 : i32
    return %arg0, %c0_i32 : i32, i32
  }
  func.func @transform_3(%arg0: i32) -> (i32, i32) {
    %c0_i32 = arith.constant 0 : i32
    %c0_i32_0 = arith.constant 0 : i32
    return %arg0, %c0_i32 : i32, i32
  }
  func.func @transform_4(%arg0: i32) -> (i32, i32) {
    %c0_i32 = arith.constant 0 : i32
    %c0_i32_0 = arith.constant 0 : i32
    return %arg0, %c0_i32 : i32, i32
  }
  func.func @transform_5(%arg0: i32) -> (i32, i32) {
    %c0_i32 = arith.constant 0 : i32
    %c0_i32_0 = arith.constant 0 : i32
    return %arg0, %c0_i32 : i32, i32
  }
}

</mosaic_0001>

<llo_original>
// kernel: tpu_custom_call.1
$region0: #{tpu_custom_call.1}
  #allocation0 [shape = 'u32[]', space=smem, size = 0x4, offset = 0x4, fixed_abs, tag = 'smem constant byte address 0x4 - core index']
  #allocation1 [shape = 'u32[72,128]{1,0:T(1,128)}', space=vmem, size = 0x9000, scoped, tag = 'internal scratch']
  %s0 = inlined_call_operand.vmem [shape: f32[256,1], index: 0, kind: input, shape index: {}]
  %s1 = inlined_call_operand.vmem [shape: f32[256,64], index: 1, kind: input, shape index: {}]
  %s2 = inlined_call_operand.vmem [shape: bf16[256,256], index: 2, kind: input, shape index: {}]
  %s3 = inlined_call_operand.vmem [shape: f32[256,1], index: 3, kind: input, shape index: {}]
  %s4 = inlined_call_operand.vmem [shape: f32[256,1], index: 4, kind: input, shape index: {}]
  %s5 = inlined_call_operand.vmem [shape: f32[256,64], index: 5, kind: output, shape index: {}]
  %s6 = sld [smem:[#allocation0]]
  $region53: #{tpu_custom_call.1} parent=0
    _
  %s8 = ssub.s32 1, %s6
  %s9 = scalar_select 0, %s8, %s6
  loop: start=0, step=1, limit=4
  $region2: #{tpu_custom_call.1} parent=0 // loop_pre_header
    _
  $region3: #{tpu_custom_call.1} parent=0 // loop_header
    %s11 = sphi 0, %s15
    %p12 = scmp.ge.s32.totalorder %s11, 4
    %s19 = sphi 0, %s19
    %s21 = sphi 0, %s19
    %s22 = sphi 0, %s21
    %s36 = sphi 0, %s22
    %s40 = sphi 0, %s40
    %s42 = sphi 0, %s40
    %s43 = sphi 0, %s42
    %s57 = sphi 0, %s43
    %s63 = sphi 0, %s65
    %s66 = sphi 0, %s63
    %s67 = sphi 0, %s66
    %s83 = sphi 0, %s67
    %s89 = sphi 0, %s91
    %s92 = sphi 0, %s89
    %s93 = sphi 0, %s92
    %s109 = sphi 0, %s93
    %s115 = sphi 0, %s117
    %s118 = sphi 0, %s115
    %s119 = sphi 0, %s118
    %s135 = sphi 0, %s119
    %s141 = sphi 0, %s143
    %s144 = sphi 0, %s141
    %s145 = sphi 0, %s144
    %s161 = sphi 0, %s145
  $region4: #{tpu_custom_call.1} parent=0 // loop_header_branch
    %14 = sbr.rel (%p12) target = $region8
  $region5: #{tpu_custom_call.1} parent=0 // loop_body
    %s16 = ssub.s32 %s11, 1
    %s17 = ssub.s32 %s11, 2
    %s18 = sadd.s32 %s11, 1
    %s20 = sadd.s32 %s19, 1
    %p23 = scmp.eq.s32.totalorder %s11, 1
    %p24 = scmp.ne.s32.totalorder %s19, %s21
    %p25 = scmp.eq.s32.totalorder %s11, 0
    %p26 = por %p24, %p25
    %p27 = scmp.ne.s32.totalorder %s19, %s21
    %p28 = scmp.eq.s32.totalorder %s16, 1
    %p29 = por %p27, %p28
    %p30 = scmp.ne.s32.totalorder %s21, %s22
    %p31 = scmp.eq.s32.totalorder %s16, 0
    %p32 = por %p30, %p31
    %p33 = scmp.ne.s32.totalorder %s21, %s22
    %p34 = scmp.eq.s32.totalorder %s17, 1
    %p35 = por %p33, %p34
    %p37 = scmp.ne.s32.totalorder %s22, %s36
    %p38 = scmp.eq.s32.totalorder %s17, 0
    %p39 = por %p37, %p38
    %s41 = sadd.s32 %s40, 1
    %p44 = scmp.eq.s32.totalorder %s11, 1
    %p45 = scmp.ne.s32.totalorder %s40, %s42
    %p46 = scmp.eq.s32.totalorder %s11, 0
    %p47 = por %p45, %p46
    %p48 = scmp.ne.s32.totalorder %s40, %s42
    %p49 = scmp.eq.s32.totalorder %s16, 1
    %p50 = por %p48, %p49
    %p51 = scmp.ne.s32.totalorder %s42, %s43
    %p52 = scmp.eq.s32.totalorder %s16, 0
    %p53 = por %p51, %p52
    %p54 = scmp.ne.s32.totalorder %s42, %s43
    %p55 = scmp.eq.s32.totalorder %s17, 1
    %p56 = por %p54, %p55
    %p58 = scmp.ne.s32.totalorder %s43, %s57
    %p59 = scmp.eq.s32.totalorder %s17, 0
    %p60 = por %p58, %p59
    %s61 = ssub.s32 %s11, %s18
    %p62 = scmp.eq.s32.totalorder %s61, 0
    %s64 = sadd.s32 %s63, 1
    %s65 = scalar_select %p62, %s63, %s64
    %p68 = pneg %p62
    %p69 = scmp.eq.s32.totalorder %s11, 1
    %p70 = por %p68, %p69
    %p71 = scmp.ne.s32.totalorder %s63, %s66
    %p72 = scmp.eq.s32.totalorder %s11, 0
    %p73 = por %p71, %p72
    %p74 = scmp.ne.s32.totalorder %s63, %s66
    %p75 = scmp.eq.s32.totalorder %s16, 1
    %p76 = por %p74, %p75
    %p77 = scmp.ne.s32.totalorder %s66, %s67
    %p78 = scmp.eq.s32.totalorder %s16, 0
    %p79 = por %p77, %p78
    %p80 = scmp.ne.s32.totalorder %s66, %s67
    %p81 = scmp.eq.s32.totalorder %s17, 1
    %p82 = por %p80, %p81
    %p84 = scmp.ne.s32.totalorder %s67, %s83
    %p85 = scmp.eq.s32.totalorder %s17, 0
    %p86 = por %p84, %p85
    %s87 = ssub.s32 %s11, %s18
    %p88 = scmp.eq.s32.totalorder %s87, 0
    %s90 = sadd.s32 %s89, 1
    %s91 = scalar_select %p88, %s89, %s90
    %p94 = pneg %p88
    %p95 = scmp.eq.s32.totalorder %s11, 1
    %p96 = por %p94, %p95
    %p97 = scmp.ne.s32.totalorder %s89, %s92
    %p98 = scmp.eq.s32.totalorder %s11, 0
    %p99 = por %p97, %p98
    %p100 = scmp.ne.s32.totalorder %s89, %s92
    %p101 = scmp.eq.s32.totalorder %s16, 1
    %p102 = por %p100, %p101
    %p103 = scmp.ne.s32.totalorder %s92, %s93
    %p104 = scmp.eq.s32.totalorder %s16, 0
    %p105 = por %p103, %p104
    %p106 = scmp.ne.s32.totalorder %s92, %s93
    %p107 = scmp.eq.s32.totalorder %s17, 1
    %p108 = por %p106, %p107
    %p110 = scmp.ne.s32.totalorder %s93, %s109
    %p111 = scmp.eq.s32.totalorder %s17, 0
    %p112 = por %p110, %p111
    %s113 = ssub.s32 %s11, %s18
    %p114 = scmp.eq.s32.totalorder %s113, 0
    %s116 = sadd.s32 %s115, 1
    %s117 = scalar_select %p114, %s115, %s116
    %p120 = pneg %p114
    %p121 = scmp.eq.s32.totalorder %s11, 1
    %p122 = por %p120, %p121
    %p123 = scmp.ne.s32.totalorder %s115, %s118
    %p124 = scmp.eq.s32.totalorder %s11, 0
    %p125 = por %p123, %p124
    %p126 = scmp.ne.s32.totalorder %s115, %s118
    %p127 = scmp.eq.s32.totalorder %s16, 1
    %p128 = por %p126, %p127
    %p129 = scmp.ne.s32.totalorder %s118, %s119
    %p130 = scmp.eq.s32.totalorder %s16, 0
    %p131 = por %p129, %p130
    %p132 = scmp.ne.s32.totalorder %s118, %s119
    %p133 = scmp.eq.s32.totalorder %s17, 1
    %p134 = por %p132, %p133
    %p136 = scmp.ne.s32.totalorder %s119, %s135
    %p137 = scmp.eq.s32.totalorder %s17, 0
    %p138 = por %p136, %p137
    %s139 = ssub.s32 %s11, %s18
    %p140 = scmp.eq.s32.totalorder %s139, 0
    %s142 = sadd.s32 %s141, 1
    %s143 = scalar_select %p140, %s141, %s142
    %p146 = pneg %p140
    %p147 = scmp.eq.s32.totalorder %s11, 1
    %p148 = por %p146, %p147
    %p149 = scmp.ne.s32.totalorder %s141, %s144
    %p150 = scmp.eq.s32.totalorder %s11, 0
    %p151 = por %p149, %p150
    %p152 = scmp.ne.s32.totalorder %s141, %s144
    %p153 = scmp.eq.s32.totalorder %s16, 1
    %p154 = por %p152, %p153
    %p155 = scmp.ne.s32.totalorder %s144, %s145
    %p156 = scmp.eq.s32.totalorder %s16, 0
    %p157 = por %p155, %p156
    %p158 = scmp.ne.s32.totalorder %s144, %s145
    %p159 = scmp.eq.s32.totalorder %s17, 1
    %p160 = por %p158, %p159
    %p162 = scmp.ne.s32.totalorder %s145, %s161
    %p163 = scmp.eq.s32.totalorder %s17, 0
    %p164 = por %p162, %p163
    %p165 = scmp.le.s32.totalorder 1, %s11
    %p166 = scmp.lt.s32.totalorder %s11, 3
    %p167 = pnand %p165, %p166
    %p168 = pneg %p167
    // Predicated region
    $region9: #{tpu_custom_call.1} parent=5 // pred_check
      _
    $region10: #{tpu_custom_call.1} parent=5 // pred_check_branch
      %170 = sbr.rel (%p167) target = $region12
    $region11: #{tpu_custom_call.1} parent=5 // pred_region
      %s171 = ssub.s32 %s11, 1
      // Predicated region
      $region13: #{tpu_custom_call.1} parent=11 // pred_check
        %p172 = pneg %p32
      $region14: #{tpu_custom_call.1} parent=11 // pred_check_branch
        %174 = sbr.rel (%p172) target = $region16
      $region15: #{tpu_custom_call.1} parent=11 // pred_region
        _
      $region16: #{tpu_custom_call.1} parent=11 // pred_fallthru
        _
      // Predicated region
      $region17: #{tpu_custom_call.1} parent=11 // pred_check
        %p175 = pneg %p53
      $region18: #{tpu_custom_call.1} parent=11 // pred_check_branch
        %177 = sbr.rel (%p175) target = $region20
      $region19: #{tpu_custom_call.1} parent=11 // pred_region
        _
      $region20: #{tpu_custom_call.1} parent=11 // pred_fallthru
        _
    $region12: #{tpu_custom_call.1} parent=5 // pred_fallthru
      _
    %p178 = scmp.lt.s32.totalorder %s11, 2
    // Predicated region
    $region21: #{tpu_custom_call.1} parent=5 // pred_check
      %p179 = pneg %p178
    $region22: #{tpu_custom_call.1} parent=5 // pred_check_branch
      %181 = sbr.rel (%p179) target = $region24
    $region23: #{tpu_custom_call.1} parent=5 // pred_region
      // Predicated region
      $region25: #{tpu_custom_call.1} parent=23 // pred_check
        %p182 = pneg %p73
      $region26: #{tpu_custom_call.1} parent=23 // pred_check_branch
        %184 = sbr.rel (%p182) target = $region28
      $region27: #{tpu_custom_call.1} parent=23 // pred_region
        %s185 = smul.u32 16, %s11
        %p186 = scmp.lt.s32.totalorder %s185, 31
        %s187 = scalar_select %p186, %s185, 31
        %s188 = smul.addr %s187, 2
        %s189 = smul.addr %s188, 4
        %s190 = scalar_lea.vmem %s2, %s189
        %s191 = smul.u32 16, %s11
      $region28: #{tpu_custom_call.1} parent=23 // pred_fallthru
        _
      // Predicated region
      $region29: #{tpu_custom_call.1} parent=23 // pred_check
        %p192 = pneg %p99
      $region30: #{tpu_custom_call.1} parent=23 // pred_check_branch
        %194 = sbr.rel (%p192) target = $region32
      $region31: #{tpu_custom_call.1} parent=23 // pred_region
        %s195 = smul.u32 16, %s11
        %p196 = scmp.lt.s32.totalorder %s195, 31
        %s197 = scalar_select %p196, %s195, 31
        %s198 = smul.addr %s197, 8
        %s199 = scalar_lea.vmem %s3, %s198
        %s200 = smul.u32 16, %s11
      $region32: #{tpu_custom_call.1} parent=23 // pred_fallthru
        _
      // Predicated region
      $region33: #{tpu_custom_call.1} parent=23 // pred_check
        %p201 = pneg %p125
      $region34: #{tpu_custom_call.1} parent=23 // pred_check_branch
        %203 = sbr.rel (%p201) target = $region36
      $region35: #{tpu_custom_call.1} parent=23 // pred_region
        %s204 = smul.u32 16, %s11
        %p205 = scmp.lt.s32.totalorder %s204, 31
        %s206 = scalar_select %p205, %s204, 31
        %s207 = smul.addr %s206, 8
        %s208 = scalar_lea.vmem %s4, %s207
        %s209 = smul.u32 16, %s11
      $region36: #{tpu_custom_call.1} parent=23 // pred_fallthru
        _
    $region24: #{tpu_custom_call.1} parent=5 // pred_fallthru
      _
    %p210 = scmp.le.s32.totalorder 1, %s11
    %p211 = scmp.lt.s32.totalorder %s11, 3
    %p212 = pnand %p210, %p211
    %p213 = pneg %p212
    // Predicated region
    $region37: #{tpu_custom_call.1} parent=5 // pred_check
      _
    $region38: #{tpu_custom_call.1} parent=5 // pred_check_branch
      %215 = sbr.rel (%p212) target = $region40
    $region39: #{tpu_custom_call.1} parent=5 // pred_region
      %s216 = ssub.s32 %s11, 1
      %p217 = pneg %p32
      %p218 = pneg %p29
      %p219 = pneg %p53
      %p220 = pneg %p50
      %s221 = smul.u32 16, %s16
      %p222 = scmp.lt.s32.totalorder %s221, 31
      %s223 = scalar_select %p222, %s221, 31
      %s224 = smul.addr %s223, 2
      %s225 = smul.addr %s224, 4
      %s226 = scalar_lea.vmem %s2, %s225
      %p227 = pneg %p79
      %p228 = pneg %p76
      %s229 = smul.u32 16, %s16
      %p230 = scmp.lt.s32.totalorder %s229, 31
      %s231 = scalar_select %p230, %s229, 31
      %s232 = smul.addr %s231, 8
      %s233 = scalar_lea.vmem %s3, %s232
      %p234 = pneg %p105
      %p235 = pneg %p102
      %s236 = smul.u32 16, %s16
      %p237 = scmp.lt.s32.totalorder %s236, 31
      %s238 = scalar_select %p237, %s236, 31
      %s239 = smul.addr %s238, 8
      %s240 = scalar_lea.vmem %s4, %s239
      %p241 = pneg %p131
      %p242 = pneg %p128
      %p243 = pneg %p157
      %p244 = pneg %p154
      %s245 = smul.u32 16, %s16
      %p246 = scmp.lt.s32.totalorder %s245, 31
      %s247 = scalar_select %p246, %s245, 31
      %s248 = smul.addr %s247, 8
      %s249 = scalar_lea.vmem %s5, %s248
      %s250 = smul.u32 16, %s16
      %p251 = scmp.lt.s32.totalorder %s250, 31
      %s252 = scalar_select %p251, %s250, 31
      %s253 = smul.addr %s252, 2
      %s254 = smul.addr %s253, 4
      %s255 = scalar_lea.vmem %s2, %s254
      %s256 = smul.u32 16, %s16
      %s257 = smul.u32 16, %s16
      %p258 = scmp.lt.s32.totalorder %s257, 31
      %s259 = scalar_select %p258, %s257, 31
      %s260 = smul.addr %s259, 8
      %s261 = scalar_lea.vmem %s3, %s260
      %s262 = smul.u32 16, %s16
      %s263 = smul.u32 16, %s16
      %p264 = scmp.lt.s32.totalorder %s263, 31
      %s265 = scalar_select %p264, %s263, 31
      %s266 = smul.addr %s265, 8
      %s267 = scalar_lea.vmem %s4, %s266
      %s268 = smul.u32 16, %s16
      %s269 = smul.u32 16, %s16
      %p270 = scmp.lt.s32.totalorder %s269, 31
      %s271 = scalar_select %p270, %s269, 31
      %s272 = smul.addr %s271, 8
      %s273 = scalar_lea.vmem %s5, %s272
      %s274 = smul.u32 16, %s16
      %v275 = vld [vmem:[%s1] sm:$0xff]
      %v276 = vld [vmem:[%s1 + $0x8] sm:$0xff]
      %v277 = vld [vmem:[%s1 + $0x10] sm:$0xff]
      %v278 = vld [vmem:[%s1 + $0x18] sm:$0xff]
      %v279 = vld [vmem:[%s1 + $0x20] sm:$0xff]
      %v280 = vld [vmem:[%s1 + $0x28] sm:$0xff]
      %v281 = vld [vmem:[%s1 + $0x30] sm:$0xff]
      %v282 = vld [vmem:[%s1 + $0x38] sm:$0xff]
      %v283 = vld [vmem:[%s1 + $0x40] sm:$0xff]
      %v284 = vld [vmem:[%s1 + $0x48] sm:$0xff]
      %v285 = vld [vmem:[%s1 + $0x50] sm:$0xff]
      %v286 = vld [vmem:[%s1 + $0x58] sm:$0xff]
      %v287 = vld [vmem:[%s1 + $0x60] sm:$0xff]
      %v288 = vld [vmem:[%s1 + $0x68] sm:$0xff]
      %v289 = vld [vmem:[%s1 + $0x70] sm:$0xff]
      %v290 = vld [vmem:[%s1 + $0x78] sm:$0xff]
      %v291 = vld [vmem:[%s1 + $0x80] sm:$0xff]
      %v292 = vld [vmem:[%s1 + $0x88] sm:$0xff]
      %v293 = vld [vmem:[%s1 + $0x90] sm:$0xff]
      %v294 = vld [vmem:[%s1 + $0x98] sm:$0xff]
      %v295 = vld [vmem:[%s1 + $0xa0] sm:$0xff]
      %v296 = vld [vmem:[%s1 + $0xa8] sm:$0xff]
      %v297 = vld [vmem:[%s1 + $0xb0] sm:$0xff]
      %v298 = vld [vmem:[%s1 + $0xb8] sm:$0xff]
      %v299 = vld [vmem:[%s1 + $0xc0] sm:$0xff]
      %v300 = vld [vmem:[%s1 + $0xc8] sm:$0xff]
      %v301 = vld [vmem:[%s1 + $0xd0] sm:$0xff]
      %v302 = vld [vmem:[%s1 + $0xd8] sm:$0xff]
      %v303 = vld [vmem:[%s1 + $0xe0] sm:$0xff]
      %v304 = vld [vmem:[%s1 + $0xe8] sm:$0xff]
      %v305 = vld [vmem:[%s1 + $0xf0] sm:$0xff]
      %v306 = vld [vmem:[%s1 + $0xf8] sm:$0xff]
      %v307 = vld [vmem:[%s0] sm:$0xff]
      %v308 = vld [vmem:[%s0 + $0x8] sm:$0xff]
      %v309 = vld [vmem:[%s0 + $0x10] sm:$0xff]
      %v310 = vld [vmem:[%s0 + $0x18] sm:$0xff]
      %v311 = vld [vmem:[%s0 + $0x20] sm:$0xff]
      %v312 = vld [vmem:[%s0 + $0x28] sm:$0xff]
      %v313 = vld [vmem:[%s0 + $0x30] sm:$0xff]
      %v314 = vld [vmem:[%s0 + $0x38] sm:$0xff]
      %v315 = vld [vmem:[%s0 + $0x40] sm:$0xff]
      %v316 = vld [vmem:[%s0 + $0x48] sm:$0xff]
      %v317 = vld [vmem:[%s0 + $0x50] sm:$0xff]
      %v318 = vld [vmem:[%s0 + $0x58] sm:$0xff]
      %v319 = vld [vmem:[%s0 + $0x60] sm:$0xff]
      %v320 = vld [vmem:[%s0 + $0x68] sm:$0xff]
      %v321 = vld [vmem:[%s0 + $0x70] sm:$0xff]
      %v322 = vld [vmem:[%s0 + $0x78] sm:$0xff]
      %v323 = vld [vmem:[%s0 + $0x80] sm:$0xff]
      %v324 = vld [vmem:[%s0 + $0x88] sm:$0xff]
      %v325 = vld [vmem:[%s0 + $0x90] sm:$0xff]
      %v326 = vld [vmem:[%s0 + $0x98] sm:$0xff]
      %v327 = vld [vmem:[%s0 + $0xa0] sm:$0xff]
      %v328 = vld [vmem:[%s0 + $0xa8] sm:$0xff]
      %v329 = vld [vmem:[%s0 + $0xb0] sm:$0xff]
      %v330 = vld [vmem:[%s0 + $0xb8] sm:$0xff]
      %v331 = vld [vmem:[%s0 + $0xc0] sm:$0xff]
      %v332 = vld [vmem:[%s0 + $0xc8] sm:$0xff]
      %v333 = vld [vmem:[%s0 + $0xd0] sm:$0xff]
      %v334 = vld [vmem:[%s0 + $0xd8] sm:$0xff]
      %v335 = vld [vmem:[%s0 + $0xe0] sm:$0xff]
      %v336 = vld [vmem:[%s0 + $0xe8] sm:$0xff]
      %v337 = vld [vmem:[%s0 + $0xf0] sm:$0xff]
      %v338 = vld [vmem:[%s0 + $0xf8] sm:$0xff]
      %v339 = vxor.u32 %v307, 2147483648
      %v340 = vxor.u32 %v308, 2147483648
      %v341 = vxor.u32 %v309, 2147483648
      %v342 = vxor.u32 %v310, 2147483648
      %v343 = vxor.u32 %v311, 2147483648
      %v344 = vxor.u32 %v312, 2147483648
      %v345 = vxor.u32 %v313, 2147483648
      %v346 = vxor.u32 %v314, 2147483648
      %v347 = vxor.u32 %v315, 2147483648
      %v348 = vxor.u32 %v316, 2147483648
      %v349 = vxor.u32 %v317, 2147483648
      %v350 = vxor.u32 %v318, 2147483648
      %v351 = vxor.u32 %v319, 2147483648
      %v352 = vxor.u32 %v320, 2147483648
      %v353 = vxor.u32 %v321, 2147483648
      %v354 = vxor.u32 %v322, 2147483648
      %v355 = vxor.u32 %v323, 2147483648
      %v356 = vxor.u32 %v324, 2147483648
      %v357 = vxor.u32 %v325, 2147483648
      %v358 = vxor.u32 %v326, 2147483648
      %v359 = vxor.u32 %v327, 2147483648
      %v360 = vxor.u32 %v328, 2147483648
      %v361 = vxor.u32 %v329, 2147483648
      %v362 = vxor.u32 %v330, 2147483648
      %v363 = vxor.u32 %v331, 2147483648
      %v364 = vxor.u32 %v332, 2147483648
      %v365 = vxor.u32 %v333, 2147483648
      %v366 = vxor.u32 %v334, 2147483648
      %v367 = vxor.u32 %v335, 2147483648
      %v368 = vxor.u32 %v336, 2147483648
      %v369 = vxor.u32 %v337, 2147483648
      %v370 = vxor.u32 %v338, 2147483648
      %v371 = vmul.f32 %v339, 1.442695
      %v372 = vpow.pop %v371
      %v373 = vmul.f32 %v340, 1.442695
      %v374 = vpow.pop %v373
      %v375 = vmul.f32 %v341, 1.442695
      %v376 = vpow.pop %v375
      %v377 = vmul.f32 %v342, 1.442695
      %v378 = vpow.pop %v377
      %v379 = vmul.f32 %v343, 1.442695
      %v380 = vpow.pop %v379
      %v381 = vmul.f32 %v344, 1.442695
      %v382 = vpow.pop %v381
      %v383 = vmul.f32 %v345, 1.442695
      %v384 = vpow.pop %v383
      %v385 = vmul.f32 %v346, 1.442695
      %v386 = vpow.pop %v385
      %v387 = vmul.f32 %v347, 1.442695
      %v388 = vpow.pop %v387
      %v389 = vmul.f32 %v348, 1.442695
      %v390 = vpow.pop %v389
      %v391 = vmul.f32 %v349, 1.442695
      %v392 = vpow.pop %v391
      %v393 = vmul.f32 %v350, 1.442695
      %v394 = vpow.pop %v393
      %v395 = vmul.f32 %v351, 1.442695
      %v396 = vpow.pop %v395
      %v397 = vmul.f32 %v352, 1.442695
      %v398 = vpow.pop %v397
      %v399 = vmul.f32 %v353, 1.442695
      %v400 = vpow.pop %v399
      %v401 = vmul.f32 %v354, 1.442695
      %v402 = vpow.pop %v401
      %v403 = vmul.f32 %v355, 1.442695
      %v404 = vpow.pop %v403
      %v405 = vmul.f32 %v356, 1.442695
      %v406 = vpow.pop %v405
      %v407 = vmul.f32 %v357, 1.442695
      %v408 = vpow.pop %v407
      %v409 = vmul.f32 %v358, 1.442695
      %v410 = vpow.pop %v409
      %v411 = vmul.f32 %v359, 1.442695
      %v412 = vpow.pop %v411
      %v413 = vmul.f32 %v360, 1.442695
      %v414 = vpow.pop %v413
      %v415 = vmul.f32 %v361, 1.442695
      %v416 = vpow.pop %v415
      %v417 = vmul.f32 %v362, 1.442695
      %v418 = vpow.pop %v417
      %v419 = vmul.f32 %v363, 1.442695
      %v420 = vpow.pop %v419
      %v421 = vmul.f32 %v364, 1.442695
      %v422 = vpow.pop %v421
      %v423 = vmul.f32 %v365, 1.442695
      %v424 = vpow.pop %v423
      %v425 = vmul.f32 %v366, 1.442695
      %v426 = vpow.pop %v425
      %v427 = vmul.f32 %v367, 1.442695
      %v428 = vpow.pop %v427
      %v429 = vmul.f32 %v368, 1.442695
      %v430 = vpow.pop %v429
      %v431 = vmul.f32 %v369, 1.442695
      %v432 = vpow.pop %v431
      %v433 = vmul.f32 %v370, 1.442695
      %v434 = vpow.pop %v433
      %v435 = vadd.f32 %v372, 1.0
      %v436 = vadd.f32 %v374, 1.0
      %v437 = vadd.f32 %v376, 1.0
      %v438 = vadd.f32 %v378, 1.0
      %v439 = vadd.f32 %v380, 1.0
      %v440 = vadd.f32 %v382, 1.0
      %v441 = vadd.f32 %v384, 1.0
      %v442 = vadd.f32 %v386, 1.0
      %v443 = vadd.f32 %v388, 1.0
      %v444 = vadd.f32 %v390, 1.0
      %v445 = vadd.f32 %v392, 1.0
      %v446 = vadd.f32 %v394, 1.0
      %v447 = vadd.f32 %v396, 1.0
      %v448 = vadd.f32 %v398, 1.0
      %v449 = vadd.f32 %v400, 1.0
      %v450 = vadd.f32 %v402, 1.0
      %v451 = vadd.f32 %v404, 1.0
      %v452 = vadd.f32 %v406, 1.0
      %v453 = vadd.f32 %v408, 1.0
      %v454 = vadd.f32 %v410, 1.0
      %v455 = vadd.f32 %v412, 1.0
      %v456 = vadd.f32 %v414, 1.0
      %v457 = vadd.f32 %v416, 1.0
      %v458 = vadd.f32 %v418, 1.0
      %v459 = vadd.f32 %v420, 1.0
      %v460 = vadd.f32 %v422, 1.0
      %v461 = vadd.f32 %v424, 1.0
      %v462 = vadd.f32 %v426, 1.0
      %v463 = vadd.f32 %v428, 1.0
      %v464 = vadd.f32 %v430, 1.0
      %v465 = vadd.f32 %v432, 1.0
      %v466 = vadd.f32 %v434, 1.0
      %v467 = vrcp.pop %v435
      %v468 = vmul.f32 %v435, %v467
      %v469 = vsub.f32 1.0, %v468
      %v470 = vmul.f32 %v467, %v469
      %v471 = vadd.f32 %v467, %v470
      %vm472 = vweird.f32 %v435
      %vm473 = vweird.f32 %v467
      %vm474 = vmor %vm472, %vm473
      %v475 = vsel %vm474, %v467, %v471
      %v476 = vand.u32 2147483647, %v435
      %vm477 = vcmp.eq.f32.partialorder %v476, 8.507059e+37
      %v478 = vand.u32 %v435, 2147483648
      %v479 = vor.u32 1.1754944e-38, %v478
      %v480 = vsel %vm477, %v479, %v475
      %v481 = vmul.f32 1.0, %v480
      %v482 = vrcp.pop %v436
      %v483 = vmul.f32 %v436, %v482
      %v484 = vsub.f32 1.0, %v483
      %v485 = vmul.f32 %v482, %v484
      %v486 = vadd.f32 %v482, %v485
      %vm487 = vweird.f32 %v436
      %vm488 = vweird.f32 %v482
      %vm489 = vmor %vm487, %vm488
      %v490 = vsel %vm489, %v482, %v486
      %v491 = vand.u32 2147483647, %v436
      %vm492 = vcmp.eq.f32.partialorder %v491, 8.507059e+37
      %v493 = vand.u32 %v436, 2147483648
      %v494 = vor.u32 1.1754944e-38, %v493
      %v495 = vsel %vm492, %v494, %v490
      %v496 = vmul.f32 1.0, %v495
      %v497 = vrcp.pop %v437
      %v498 = vmul.f32 %v437, %v497
      %v499 = vsub.f32 1.0, %v498
      %v500 = vmul.f32 %v497, %v499
      %v501 = vadd.f32 %v497, %v500
      %vm502 = vweird.f32 %v437
      %vm503 = vweird.f32 %v497
      %vm504 = vmor %vm502, %vm503
      %v505 = vsel %vm504, %v497, %v501
      %v506 = vand.u32 2147483647, %v437
      %vm507 = vcmp.eq.f32.partialorder %v506, 8.507059e+37
      %v508 = vand.u32 %v437, 2147483648
      %v509 = vor.u32 1.1754944e-38, %v508
      %v510 = vsel %vm507, %v509, %v505
      %v511 = vmul.f32 1.0, %v510
      %v512 = vrcp.pop %v438
      %v513 = vmul.f32 %v438, %v512
      %v514 = vsub.f32 1.0, %v513
      %v515 = vmul.f32 %v512, %v514
      %v516 = vadd.f32 %v512, %v515
      %vm517 = vweird.f32 %v438
      %vm518 = vweird.f32 %v512
      %vm519 = vmor %vm517, %vm518
      %v520 = vsel %vm519, %v512, %v516
      %v521 = vand.u32 2147483647, %v438
      %vm522 = vcmp.eq.f32.partialorder %v521, 8.507059e+37
      %v523 = vand.u32 %v438, 2147483648
      %v524 = vor.u32 1.1754944e-38, %v523
      %v525 = vsel %vm522, %v524, %v520
      %v526 = vmul.f32 1.0, %v525
      %v527 = vrcp.pop %v439
      %v528 = vmul.f32 %v439, %v527
      %v529 = vsub.f32 1.0, %v528
      %v530 = vmul.f32 %v527, %v529
      %v531 = vadd.f32 %v527, %v530
      %vm532 = vweird.f32 %v439
      %vm533 = vweird.f32 %v527
      %vm534 = vmor %vm532, %vm533
      %v535 = vsel %vm534, %v527, %v531
      %v536 = vand.u32 2147483647, %v439
      %vm537 = vcmp.eq.f32.partialorder %v536, 8.507059e+37
      %v538 = vand.u32 %v439, 2147483648
      %v539 = vor.u32 1.1754944e-38, %v538
      %v540 = vsel %vm537, %v539, %v535
      %v541 = vmul.f32 1.0, %v540
      %v542 = vrcp.pop %v440
      %v543 = vmul.f32 %v440, %v542
      %v544 = vsub.f32 1.0, %v543
      %v545 = vmul.f32 %v542, %v544
      %v546 = vadd.f32 %v542, %v545
      %vm547 = vweird.f32 %v440
      %vm548 = vweird.f32 %v542
      %vm549 = vmor %vm547, %vm548
      %v550 = vsel %vm549, %v542, %v546
      %v551 = vand.u32 2147483647, %v440
      %vm552 = vcmp.eq.f32.partialorder %v551, 8.507059e+37
      %v553 = vand.u32 %v440, 2147483648
      %v554 = vor.u32 1.1754944e-38, %v553
      %v555 = vsel %vm552, %v554, %v550
      %v556 = vmul.f32 1.0, %v555
      %v557 = vrcp.pop %v441
      %v558 = vmul.f32 %v441, %v557
      %v559 = vsub.f32 1.0, %v558
      %v560 = vmul.f32 %v557, %v559
      %v561 = vadd.f32 %v557, %v560
      %vm562 = vweird.f32 %v441
      %vm563 = vweird.f32 %v557
      %vm564 = vmor %vm562, %vm563
      %v565 = vsel %vm564, %v557, %v561
      %v566 = vand.u32 2147483647, %v441
      %vm567 = vcmp.eq.f32.partialorder %v566, 8.507059e+37
      %v568 = vand.u32 %v441, 2147483648
      %v569 = vor.u32 1.1754944e-38, %v568
      %v570 = vsel %vm567, %v569, %v565
      %v571 = vmul.f32 1.0, %v570
      %v572 = vrcp.pop %v442
      %v573 = vmul.f32 %v442, %v572
      %v574 = vsub.f32 1.0, %v573
      %v575 = vmul.f32 %v572, %v574
      %v576 = vadd.f32 %v572, %v575
      %vm577 = vweird.f32 %v442
      %vm578 = vweird.f32 %v572
      %vm579 = vmor %vm577, %vm578
      %v580 = vsel %vm579, %v572, %v576
      %v581 = vand.u32 2147483647, %v442
      %vm582 = vcmp.eq.f32.partialorder %v581, 8.507059e+37
      %v583 = vand.u32 %v442, 2147483648
      %v584 = vor.u32 1.1754944e-38, %v583
      %v585 = vsel %vm582, %v584, %v580
      %v586 = vmul.f32 1.0, %v585
      %v587 = vrcp.pop %v443
      %v588 = vmul.f32 %v443, %v587
      %v589 = vsub.f32 1.0, %v588
      %v590 = vmul.f32 %v587, %v589
      %v591 = vadd.f32 %v587, %v590
      %vm592 = vweird.f32 %v443
      %vm593 = vweird.f32 %v587
      %vm594 = vmor %vm592, %vm593
      %v595 = vsel %vm594, %v587, %v591
      %v596 = vand.u32 2147483647, %v443
      %vm597 = vcmp.eq.f32.partialorder %v596, 8.507059e+37
      %v598 = vand.u32 %v443, 2147483648
      %v599 = vor.u32 1.1754944e-38, %v598
      %v600 = vsel %vm597, %v599, %v595
      %v601 = vmul.f32 1.0, %v600
      %v602 = vrcp.pop %v444
      %v603 = vmul.f32 %v444, %v602
      %v604 = vsub.f32 1.0, %v603
      %v605 = vmul.f32 %v602, %v604
      %v606 = vadd.f32 %v602, %v605
      %vm607 = vweird.f32 %v444
      %vm608 = vweird.f32 %v602
      %vm609 = vmor %vm607, %vm608
      %v610 = vsel %vm609, %v602, %v606
      %v611 = vand.u32 2147483647, %v444
      %vm612 = vcmp.eq.f32.partialorder %v611, 8.507059e+37
      %v613 = vand.u32 %v444, 2147483648
      %v614 = vor.u32 1.1754944e-38, %v613
      %v615 = vsel %vm612, %v614, %v610
      %v616 = vmul.f32 1.0, %v615
      %v617 = vrcp.pop %v445
      %v618 = vmul.f32 %v445, %v617
      %v619 = vsub.f32 1.0, %v618
      %v620 = vmul.f32 %v617, %v619
      %v621 = vadd.f32 %v617, %v620
      %vm622 = vweird.f32 %v445
      %vm623 = vweird.f32 %v617
      %vm624 = vmor %vm622, %vm623
      %v625 = vsel %vm624, %v617, %v621
      %v626 = vand.u32 2147483647, %v445
      %vm627 = vcmp.eq.f32.partialorder %v626, 8.507059e+37
      %v628 = vand.u32 %v445, 2147483648
      %v629 = vor.u32 1.1754944e-38, %v628
      %v630 = vsel %vm627, %v629, %v625
      %v631 = vmul.f32 1.0, %v630
      %v632 = vrcp.pop %v446
      %v633 = vmul.f32 %v446, %v632
      %v634 = vsub.f32 1.0, %v633
      %v635 = vmul.f32 %v632, %v634
      %v636 = vadd.f32 %v632, %v635
      %vm637 = vweird.f32 %v446
      %vm638 = vweird.f32 %v632
      %vm639 = vmor %vm637, %vm638
      %v640 = vsel %vm639, %v632, %v636
      %v641 = vand.u32 2147483647, %v446
      %vm642 = vcmp.eq.f32.partialorder %v641, 8.507059e+37
      %v643 = vand.u32 %v446, 2147483648
      %v644 = vor.u32 1.1754944e-38, %v643
      %v645 = vsel %vm642, %v644, %v640
      %v646 = vmul.f32 1.0, %v645
      %v647 = vrcp.pop %v447
      %v648 = vmul.f32 %v447, %v647
      %v649 = vsub.f32 1.0, %v648
      %v650 = vmul.f32 %v647, %v649
      %v651 = vadd.f32 %v647, %v650
      %vm652 = vweird.f32 %v447
      %vm653 = vweird.f32 %v647
      %vm654 = vmor %vm652, %vm653
      %v655 = vsel %vm654, %v647, %v651
      %v656 = vand.u32 2147483647, %v447
      %vm657 = vcmp.eq.f32.partialorder %v656, 8.507059e+37
      %v658 = vand.u32 %v447, 2147483648
      %v659 = vor.u32 1.1754944e-38, %v658
      %v660 = vsel %vm657, %v659, %v655
      %v661 = vmul.f32 1.0, %v660
      %v662 = vrcp.pop %v448
      %v663 = vmul.f32 %v448, %v662
      %v664 = vsub.f32 1.0, %v663
      %v665 = vmul.f32 %v662, %v664
      %v666 = vadd.f32 %v662, %v665
      %vm667 = vweird.f32 %v448
      %vm668 = vweird.f32 %v662
      %vm669 = vmor %vm667, %vm668
      %v670 = vsel %vm669, %v662, %v666
      %v671 = vand.u32 2147483647, %v448
      %vm672 = vcmp.eq.f32.partialorder %v671, 8.507059e+37
      %v673 = vand.u32 %v448, 2147483648
      %v674 = vor.u32 1.1754944e-38, %v673
      %v675 = vsel %vm672, %v674, %v670
      %v676 = vmul.f32 1.0, %v675
      %v677 = vrcp.pop %v449
      %v678 = vmul.f32 %v449, %v677
      %v679 = vsub.f32 1.0, %v678
      %v680 = vmul.f32 %v677, %v679
      %v681 = vadd.f32 %v677, %v680
      %vm682 = vweird.f32 %v449
      %vm683 = vweird.f32 %v677
      %vm684 = vmor %vm682, %vm683
      %v685 = vsel %vm684, %v677, %v681
      %v686 = vand.u32 2147483647, %v449
      %vm687 = vcmp.eq.f32.partialorder %v686, 8.507059e+37
      %v688 = vand.u32 %v449, 2147483648
      %v689 = vor.u32 1.1754944e-38, %v688
      %v690 = vsel %vm687, %v689, %v685
      %v691 = vmul.f32 1.0, %v690
      %v692 = vrcp.pop %v450
      %v693 = vmul.f32 %v450, %v692
      %v694 = vsub.f32 1.0, %v693
      %v695 = vmul.f32 %v692, %v694
      %v696 = vadd.f32 %v692, %v695
      %vm697 = vweird.f32 %v450
      %vm698 = vweird.f32 %v692
      %vm699 = vmor %vm697, %vm698
      %v700 = vsel %vm699, %v692, %v696
      %v701 = vand.u32 2147483647, %v450
      %vm702 = vcmp.eq.f32.partialorder %v701, 8.507059e+37
      %v703 = vand.u32 %v450, 2147483648
      %v704 = vor.u32 1.1754944e-38, %v703
      %v705 = vsel %vm702, %v704, %v700
      %v706 = vmul.f32 1.0, %v705
      %v707 = vrcp.pop %v451
      %v708 = vmul.f32 %v451, %v707
      %v709 = vsub.f32 1.0, %v708
      %v710 = vmul.f32 %v707, %v709
      %v711 = vadd.f32 %v707, %v710
      %vm712 = vweird.f32 %v451
      %vm713 = vweird.f32 %v707
      %vm714 = vmor %vm712, %vm713
      %v715 = vsel %vm714, %v707, %v711
      %v716 = vand.u32 2147483647, %v451
      %vm717 = vcmp.eq.f32.partialorder %v716, 8.507059e+37
      %v718 = vand.u32 %v451, 2147483648
      %v719 = vor.u32 1.1754944e-38, %v718
      %v720 = vsel %vm717, %v719, %v715
      %v721 = vmul.f32 1.0, %v720
      %v722 = vrcp.pop %v452
      %v723 = vmul.f32 %v452, %v722
      %v724 = vsub.f32 1.0, %v723
      %v725 = vmul.f32 %v722, %v724
      %v726 = vadd.f32 %v722, %v725
      %vm727 = vweird.f32 %v452
      %vm728 = vweird.f32 %v722
      %vm729 = vmor %vm727, %vm728
      %v730 = vsel %vm729, %v722, %v726
      %v731 = vand.u32 2147483647, %v452
      %vm732 = vcmp.eq.f32.partialorder %v731, 8.507059e+37
      %v733 = vand.u32 %v452, 2147483648
      %v734 = vor.u32 1.1754944e-38, %v733
      %v735 = vsel %vm732, %v734, %v730
      %v736 = vmul.f32 1.0, %v735
      %v737 = vrcp.pop %v453
      %v738 = vmul.f32 %v453, %v737
      %v739 = vsub.f32 1.0, %v738
      %v740 = vmul.f32 %v737, %v739
      %v741 = vadd.f32 %v737, %v740
      %vm742 = vweird.f32 %v453
      %vm743 = vweird.f32 %v737
      %vm744 = vmor %vm742, %vm743
      %v745 = vsel %vm744, %v737, %v741
      %v746 = vand.u32 2147483647, %v453
      %vm747 = vcmp.eq.f32.partialorder %v746, 8.507059e+37
      %v748 = vand.u32 %v453, 2147483648
      %v749 = vor.u32 1.1754944e-38, %v748
      %v750 = vsel %vm747, %v749, %v745
      %v751 = vmul.f32 1.0, %v750
      %v752 = vrcp.pop %v454
      %v753 = vmul.f32 %v454, %v752
      %v754 = vsub.f32 1.0, %v753
      %v755 = vmul.f32 %v752, %v754
      %v756 = vadd.f32 %v752, %v755
      %vm757 = vweird.f32 %v454
      %vm758 = vweird.f32 %v752
      %vm759 = vmor %vm757, %vm758
      %v760 = vsel %vm759, %v752, %v756
      %v761 = vand.u32 2147483647, %v454
      %vm762 = vcmp.eq.f32.partialorder %v761, 8.507059e+37
      %v763 = vand.u32 %v454, 2147483648
      %v764 = vor.u32 1.1754944e-38, %v763
      %v765 = vsel %vm762, %v764, %v760
      %v766 = vmul.f32 1.0, %v765
      %v767 = vrcp.pop %v455
      %v768 = vmul.f32 %v455, %v767
      %v769 = vsub.f32 1.0, %v768
      %v770 = vmul.f32 %v767, %v769
      %v771 = vadd.f32 %v767, %v770
      %vm772 = vweird.f32 %v455
      %vm773 = vweird.f32 %v767
      %vm774 = vmor %vm772, %vm773
      %v775 = vsel %vm774, %v767, %v771
      %v776 = vand.u32 2147483647, %v455
      %vm777 = vcmp.eq.f32.partialorder %v776, 8.507059e+37
      %v778 = vand.u32 %v455, 2147483648
      %v779 = vor.u32 1.1754944e-38, %v778
      %v780 = vsel %vm777, %v779, %v775
      %v781 = vmul.f32 1.0, %v780
      %v782 = vrcp.pop %v456
      %v783 = vmul.f32 %v456, %v782
      %v784 = vsub.f32 1.0, %v783
      %v785 = vmul.f32 %v782, %v784
      %v786 = vadd.f32 %v782, %v785
      %vm787 = vweird.f32 %v456
      %vm788 = vweird.f32 %v782
      %vm789 = vmor %vm787, %vm788
      %v790 = vsel %vm789, %v782, %v786
      %v791 = vand.u32 2147483647, %v456
      %vm792 = vcmp.eq.f32.partialorder %v791, 8.507059e+37
      %v793 = vand.u32 %v456, 2147483648
      %v794 = vor.u32 1.1754944e-38, %v793
      %v795 = vsel %vm792, %v794, %v790
      %v796 = vmul.f32 1.0, %v795
      %v797 = vrcp.pop %v457
      %v798 = vmul.f32 %v457, %v797
      %v799 = vsub.f32 1.0, %v798
      %v800 = vmul.f32 %v797, %v799
      %v801 = vadd.f32 %v797, %v800
      %vm802 = vweird.f32 %v457
      %vm803 = vweird.f32 %v797
      %vm804 = vmor %vm802, %vm803
      %v805 = vsel %vm804, %v797, %v801
      %v806 = vand.u32 2147483647, %v457
      %vm807 = vcmp.eq.f32.partialorder %v806, 8.507059e+37
      %v808 = vand.u32 %v457, 2147483648
      %v809 = vor.u32 1.1754944e-38, %v808
      %v810 = vsel %vm807, %v809, %v805
      %v811 = vmul.f32 1.0, %v810
      %v812 = vrcp.pop %v458
      %v813 = vmul.f32 %v458, %v812
      %v814 = vsub.f32 1.0, %v813
      %v815 = vmul.f32 %v812, %v814
      %v816 = vadd.f32 %v812, %v815
      %vm817 = vweird.f32 %v458
      %vm818 = vweird.f32 %v812
      %vm819 = vmor %vm817, %vm818
      %v820 = vsel %vm819, %v812, %v816
      %v821 = vand.u32 2147483647, %v458
      %vm822 = vcmp.eq.f32.partialorder %v821, 8.507059e+37
      %v823 = vand.u32 %v458, 2147483648
      %v824 = vor.u32 1.1754944e-38, %v823
      %v825 = vsel %vm822, %v824, %v820
      %v826 = vmul.f32 1.0, %v825
      %v827 = vrcp.pop %v459
      %v828 = vmul.f32 %v459, %v827
      %v829 = vsub.f32 1.0, %v828
      %v830 = vmul.f32 %v827, %v829
      %v831 = vadd.f32 %v827, %v830
      %vm832 = vweird.f32 %v459
      %vm833 = vweird.f32 %v827
      %vm834 = vmor %vm832, %vm833
      %v835 = vsel %vm834, %v827, %v831
      %v836 = vand.u32 2147483647, %v459
      %vm837 = vcmp.eq.f32.partialorder %v836, 8.507059e+37
      %v838 = vand.u32 %v459, 2147483648
      %v839 = vor.u32 1.1754944e-38, %v838
      %v840 = vsel %vm837, %v839, %v835
      %v841 = vmul.f32 1.0, %v840
      %v842 = vrcp.pop %v460
      %v843 = vmul.f32 %v460, %v842
      %v844 = vsub.f32 1.0, %v843
      %v845 = vmul.f32 %v842, %v844
      %v846 = vadd.f32 %v842, %v845
      %vm847 = vweird.f32 %v460
      %vm848 = vweird.f32 %v842
      %vm849 = vmor %vm847, %vm848
      %v850 = vsel %vm849, %v842, %v846
      %v851 = vand.u32 2147483647, %v460
      %vm852 = vcmp.eq.f32.partialorder %v851, 8.507059e+37
      %v853 = vand.u32 %v460, 2147483648
      %v854 = vor.u32 1.1754944e-38, %v853
      %v855 = vsel %vm852, %v854, %v850
      %v856 = vmul.f32 1.0, %v855
      %v857 = vrcp.pop %v461
      %v858 = vmul.f32 %v461, %v857
      %v859 = vsub.f32 1.0, %v858
      %v860 = vmul.f32 %v857, %v859
      %v861 = vadd.f32 %v857, %v860
      %vm862 = vweird.f32 %v461
      %vm863 = vweird.f32 %v857
      %vm864 = vmor %vm862, %vm863
      %v865 = vsel %vm864, %v857, %v861
      %v866 = vand.u32 2147483647, %v461
      %vm867 = vcmp.eq.f32.partialorder %v866, 8.507059e+37
      %v868 = vand.u32 %v461, 2147483648
      %v869 = vor.u32 1.1754944e-38, %v868
      %v870 = vsel %vm867, %v869, %v865
      %v871 = vmul.f32 1.0, %v870
      %v872 = vrcp.pop %v462
      %v873 = vmul.f32 %v462, %v872
      %v874 = vsub.f32 1.0, %v873
      %v875 = vmul.f32 %v872, %v874
      %v876 = vadd.f32 %v872, %v875
      %vm877 = vweird.f32 %v462
      %vm878 = vweird.f32 %v872
      %vm879 = vmor %vm877, %vm878
      %v880 = vsel %vm879, %v872, %v876
      %v881 = vand.u32 2147483647, %v462
      %vm882 = vcmp.eq.f32.partialorder %v881, 8.507059e+37
      %v883 = vand.u32 %v462, 2147483648
      %v884 = vor.u32 1.1754944e-38, %v883
      %v885 = vsel %vm882, %v884, %v880
      %v886 = vmul.f32 1.0, %v885
      %v887 = vrcp.pop %v463
      %v888 = vmul.f32 %v463, %v887
      %v889 = vsub.f32 1.0, %v888
      %v890 = vmul.f32 %v887, %v889
      %v891 = vadd.f32 %v887, %v890
      %vm892 = vweird.f32 %v463
      %vm893 = vweird.f32 %v887
      %vm894 = vmor %vm892, %vm893
      %v895 = vsel %vm894, %v887, %v891
      %v896 = vand.u32 2147483647, %v463
      %vm897 = vcmp.eq.f32.partialorder %v896, 8.507059e+37
      %v898 = vand.u32 %v463, 2147483648
      %v899 = vor.u32 1.1754944e-38, %v898
      %v900 = vsel %vm897, %v899, %v895
      %v901 = vmul.f32 1.0, %v900
      %v902 = vrcp.pop %v464
      %v903 = vmul.f32 %v464, %v902
      %v904 = vsub.f32 1.0, %v903
      %v905 = vmul.f32 %v902, %v904
      %v906 = vadd.f32 %v902, %v905
      %vm907 = vweird.f32 %v464
      %vm908 = vweird.f32 %v902
      %vm909 = vmor %vm907, %vm908
      %v910 = vsel %vm909, %v902, %v906
      %v911 = vand.u32 2147483647, %v464
      %vm912 = vcmp.eq.f32.partialorder %v911, 8.507059e+37
      %v913 = vand.u32 %v464, 2147483648
      %v914 = vor.u32 1.1754944e-38, %v913
      %v915 = vsel %vm912, %v914, %v910
      %v916 = vmul.f32 1.0, %v915
      %v917 = vrcp.pop %v465
      %v918 = vmul.f32 %v465, %v917
      %v919 = vsub.f32 1.0, %v918
      %v920 = vmul.f32 %v917, %v919
      %v921 = vadd.f32 %v917, %v920
      %vm922 = vweird.f32 %v465
      %vm923 = vweird.f32 %v917
      %vm924 = vmor %vm922, %vm923
      %v925 = vsel %vm924, %v917, %v921
      %v926 = vand.u32 2147483647, %v465
      %vm927 = vcmp.eq.f32.partialorder %v926, 8.507059e+37
      %v928 = vand.u32 %v465, 2147483648
      %v929 = vor.u32 1.1754944e-38, %v928
      %v930 = vsel %vm927, %v929, %v925
      %v931 = vmul.f32 1.0, %v930
      %v932 = vrcp.pop %v466
      %v933 = vmul.f32 %v466, %v932
      %v934 = vsub.f32 1.0, %v933
      %v935 = vmul.f32 %v932, %v934
      %v936 = vadd.f32 %v932, %v935
      %vm937 = vweird.f32 %v466
      %vm938 = vweird.f32 %v932
      %vm939 = vmor %vm937, %vm938
      %v940 = vsel %vm939, %v932, %v936
      %v941 = vand.u32 2147483647, %v466
      %vm942 = vcmp.eq.f32.partialorder %v941, 8.507059e+37
      %v943 = vand.u32 %v466, 2147483648
      %v944 = vor.u32 1.1754944e-38, %v943
      %v945 = vsel %vm942, %v944, %v940
      %v946 = vmul.f32 1.0, %v945
      %948 = vset.pattern.permute.xlu0 0
      %949 = vperm.xlu0 %948, %v481
      %v950 = vpop.permute.xlu0 %949
      %953 = vset.pattern.permute.xlu0 0
      %954 = vperm.xlu0 %953, %v496
      %v955 = vpop.permute.xlu0 %954
      %958 = vset.pattern.permute.xlu0 0
      %959 = vperm.xlu0 %958, %v511
      %v960 = vpop.permute.xlu0 %959
      %963 = vset.pattern.permute.xlu0 0
      %964 = vperm.xlu0 %963, %v526
      %v965 = vpop.permute.xlu0 %964
      %968 = vset.pattern.permute.xlu0 0
      %969 = vperm.xlu0 %968, %v541
      %v970 = vpop.permute.xlu0 %969
      %973 = vset.pattern.permute.xlu0 0
      %974 = vperm.xlu0 %973, %v556
      %v975 = vpop.permute.xlu0 %974
      %978 = vset.pattern.permute.xlu0 0
      %979 = vperm.xlu0 %978, %v571
      %v980 = vpop.permute.xlu0 %979
      %983 = vset.pattern.permute.xlu0 0
      %984 = vperm.xlu0 %983, %v586
      %v985 = vpop.permute.xlu0 %984
      %988 = vset.pattern.permute.xlu0 0
      %989 = vperm.xlu0 %988, %v601
      %v990 = vpop.permute.xlu0 %989
      %993 = vset.pattern.permute.xlu0 0
      %994 = vperm.xlu0 %993, %v616
      %v995 = vpop.permute.xlu0 %994
      %998 = vset.pattern.permute.xlu0 0
      %999 = vperm.xlu0 %998, %v631
      %v1000 = vpop.permute.xlu0 %999
      %1003 = vset.pattern.permute.xlu0 0
      %1004 = vperm.xlu0 %1003, %v646
      %v1005 = vpop.permute.xlu0 %1004
      %1008 = vset.pattern.permute.xlu0 0
      %1009 = vperm.xlu0 %1008, %v661
      %v1010 = vpop.permute.xlu0 %1009
      %1013 = vset.pattern.permute.xlu0 0
      %1014 = vperm.xlu0 %1013, %v676
      %v1015 = vpop.permute.xlu0 %1014
      %1018 = vset.pattern.permute.xlu0 0
      %1019 = vperm.xlu0 %1018, %v691
      %v1020 = vpop.permute.xlu0 %1019
      %1023 = vset.pattern.permute.xlu0 0
      %1024 = vperm.xlu0 %1023, %v706
      %v1025 = vpop.permute.xlu0 %1024
      %1028 = vset.pattern.permute.xlu0 0
      %1029 = vperm.xlu0 %1028, %v721
      %v1030 = vpop.permute.xlu0 %1029
      %1033 = vset.pattern.permute.xlu0 0
      %1034 = vperm.xlu0 %1033, %v736
      %v1035 = vpop.permute.xlu0 %1034
      %1038 = vset.pattern.permute.xlu0 0
      %1039 = vperm.xlu0 %1038, %v751
      %v1040 = vpop.permute.xlu0 %1039
      %1043 = vset.pattern.permute.xlu0 0
      %1044 = vperm.xlu0 %1043, %v766
      %v1045 = vpop.permute.xlu0 %1044
      %1048 = vset.pattern.permute.xlu0 0
      %1049 = vperm.xlu0 %1048, %v781
      %v1050 = vpop.permute.xlu0 %1049
      %1053 = vset.pattern.permute.xlu0 0
      %1054 = vperm.xlu0 %1053, %v796
      %v1055 = vpop.permute.xlu0 %1054
      %1058 = vset.pattern.permute.xlu0 0
      %1059 = vperm.xlu0 %1058, %v811
      %v1060 = vpop.permute.xlu0 %1059
      %1063 = vset.pattern.permute.xlu0 0
      %1064 = vperm.xlu0 %1063, %v826
      %v1065 = vpop.permute.xlu0 %1064
      %1068 = vset.pattern.permute.xlu0 0
      %1069 = vperm.xlu0 %1068, %v841
      %v1070 = vpop.permute.xlu0 %1069
      %1073 = vset.pattern.permute.xlu0 0
      %1074 = vperm.xlu0 %1073, %v856
      %v1075 = vpop.permute.xlu0 %1074
      %1078 = vset.pattern.permute.xlu0 0
      %1079 = vperm.xlu0 %1078, %v871
      %v1080 = vpop.permute.xlu0 %1079
      %1083 = vset.pattern.permute.xlu0 0
      %1084 = vperm.xlu0 %1083, %v886
      %v1085 = vpop.permute.xlu0 %1084
      %1088 = vset.pattern.permute.xlu0 0
      %1089 = vperm.xlu0 %1088, %v901
      %v1090 = vpop.permute.xlu0 %1089
      %1093 = vset.pattern.permute.xlu0 0
      %1094 = vperm.xlu0 %1093, %v916
      %v1095 = vpop.permute.xlu0 %1094
      %1098 = vset.pattern.permute.xlu0 0
      %1099 = vperm.xlu0 %1098, %v931
      %v1100 = vpop.permute.xlu0 %1099
      %1103 = vset.pattern.permute.xlu0 0
      %1104 = vperm.xlu0 %1103, %v946
      %v1105 = vpop.permute.xlu0 %1104
      %v1107 = vmul.f32 %v275, %v950
      %v1108 = vmul.f32 %v276, %v955
      %v1109 = vmul.f32 %v277, %v960
      %v1110 = vmul.f32 %v278, %v965
      %v1111 = vmul.f32 %v279, %v970
      %v1112 = vmul.f32 %v280, %v975
      %v1113 = vmul.f32 %v281, %v980
      %v1114 = vmul.f32 %v282, %v985
      %v1115 = vmul.f32 %v283, %v990
      %v1116 = vmul.f32 %v284, %v995
      %v1117 = vmul.f32 %v285, %v1000
      %v1118 = vmul.f32 %v286, %v1005
      %v1119 = vmul.f32 %v287, %v1010
      %v1120 = vmul.f32 %v288, %v1015
      %v1121 = vmul.f32 %v289, %v1020
      %v1122 = vmul.f32 %v290, %v1025
      %v1123 = vmul.f32 %v291, %v1030
      %v1124 = vmul.f32 %v292, %v1035
      %v1125 = vmul.f32 %v293, %v1040
      %v1126 = vmul.f32 %v294, %v1045
      %v1127 = vmul.f32 %v295, %v1050
      %v1128 = vmul.f32 %v296, %v1055
      %v1129 = vmul.f32 %v297, %v1060
      %v1130 = vmul.f32 %v298, %v1065
      %v1131 = vmul.f32 %v299, %v1070
      %v1132 = vmul.f32 %v300, %v1075
      %v1133 = vmul.f32 %v301, %v1080
      %v1134 = vmul.f32 %v302, %v1085
      %v1135 = vmul.f32 %v303, %v1090
      %v1136 = vmul.f32 %v304, %v1095
      %v1137 = vmul.f32 %v305, %v1100
      %v1138 = vmul.f32 %v306, %v1105
      %v1139 = vpack.c.bf16 %v1108, %v1107
      %v1140 = vpack.c.bf16 %v1110, %v1109
      %v1141 = vpack.c.bf16 %v1112, %v1111
      %v1142 = vpack.c.bf16 %v1114, %v1113
      %v1143 = vpack.c.bf16 %v1116, %v1115
      %v1144 = vpack.c.bf16 %v1118, %v1117
      %v1145 = vpack.c.bf16 %v1120, %v1119
      %v1146 = vpack.c.bf16 %v1122, %v1121
      %v1147 = vpack.c.bf16 %v1124, %v1123
      %v1148 = vpack.c.bf16 %v1126, %v1125
      %v1149 = vpack.c.bf16 %v1128, %v1127
      %v1150 = vpack.c.bf16 %v1130, %v1129
      %v1151 = vpack.c.bf16 %v1132, %v1131
      %v1152 = vpack.c.bf16 %v1134, %v1133
      %v1153 = vpack.c.bf16 %v1136, %v1135
      %v1154 = vpack.c.bf16 %v1138, %v1137
      %v1155 = vld [vmem:[%s255] sm:$0xff]
      %v1156 = vld [vmem:[%s255 + $0x8] sm:$0xff]
      %v1157 = vld [vmem:[%s255 + $0x10] sm:$0xff]
      %v1158 = vld [vmem:[%s255 + $0x18] sm:$0xff]
      %v1159 = vld [vmem:[%s255 + $0x20] sm:$0xff]
      %v1160 = vld [vmem:[%s255 + $0x28] sm:$0xff]
      %v1161 = vld [vmem:[%s255 + $0x30] sm:$0xff]
      %v1162 = vld [vmem:[%s255 + $0x38] sm:$0xff]
      %v1163 = vld [vmem:[%s255 + $0x40] sm:$0xff]
      %v1164 = vld [vmem:[%s255 + $0x48] sm:$0xff]
      %v1165 = vld [vmem:[%s255 + $0x50] sm:$0xff]
      %v1166 = vld [vmem:[%s255 + $0x58] sm:$0xff]
      %v1167 = vld [vmem:[%s255 + $0x60] sm:$0xff]
      %v1168 = vld [vmem:[%s255 + $0x68] sm:$0xff]
      %v1169 = vld [vmem:[%s255 + $0x70] sm:$0xff]
      %v1170 = vld [vmem:[%s255 + $0x78] sm:$0xff]
      %v1187 = vunpack.c.l.b16 %v1155
      %v1188 = vunpack.c.h.b16 %v1155
      %v1189 = vunpack.c.l.b16 %v1156
      %v1190 = vunpack.c.h.b16 %v1156
      %v1191 = vunpack.c.l.b16 %v1157
      %v1192 = vunpack.c.h.b16 %v1157
      %v1193 = vunpack.c.l.b16 %v1158
      %v1194 = vunpack.c.h.b16 %v1158
      %v1195 = vunpack.c.l.b16 %v1159
      %v1196 = vunpack.c.h.b16 %v1159
      %v1197 = vunpack.c.l.b16 %v1160
      %v1198 = vunpack.c.h.b16 %v1160
      %v1199 = vunpack.c.l.b16 %v1161
      %v1200 = vunpack.c.h.b16 %v1161
      %v1201 = vunpack.c.l.b16 %v1162
      %v1202 = vunpack.c.h.b16 %v1162
      %v1203 = vunpack.c.l.b16 %v1163
      %v1204 = vunpack.c.h.b16 %v1163
      %v1205 = vunpack.c.l.b16 %v1164
      %v1206 = vunpack.c.h.b16 %v1164
      %v1207 = vunpack.c.l.b16 %v1165
      %v1208 = vunpack.c.h.b16 %v1165
      %v1209 = vunpack.c.l.b16 %v1166
      %v1210 = vunpack.c.h.b16 %v1166
      %v1211 = vunpack.c.l.b16 %v1167
      %v1212 = vunpack.c.h.b16 %v1167
      %v1213 = vunpack.c.l.b16 %v1168
      %v1214 = vunpack.c.h.b16 %v1168
      %v1215 = vunpack.c.l.b16 %v1169
      %v1216 = vunpack.c.h.b16 %v1169
      %v1217 = vunpack.c.l.b16 %v1170
      %v1218 = vunpack.c.h.b16 %v1170
      %v1219 = vpack.c.b16 %v1189, %v1187
      %v1220 = vpack.c.b16 %v1190, %v1188
      %v1221 = vpack.c.b16 %v1193, %v1191
      %v1222 = vpack.c.b16 %v1194, %v1192
      %v1223 = vpack.c.b16 %v1197, %v1195
      %v1224 = vpack.c.b16 %v1198, %v1196
      %v1225 = vpack.c.b16 %v1201, %v1199
      %v1226 = vpack.c.b16 %v1202, %v1200
      %v1227 = vpack.c.b16 %v1205, %v1203
      %v1228 = vpack.c.b16 %v1206, %v1204
      %v1229 = vpack.c.b16 %v1209, %v1207
      %v1230 = vpack.c.b16 %v1210, %v1208
      %v1231 = vpack.c.b16 %v1213, %v1211
      %v1232 = vpack.c.b16 %v1214, %v1212
      %v1233 = vpack.c.b16 %v1217, %v1215
      %v1234 = vpack.c.b16 %v1218, %v1216
      %1251 = vmatpush.bf16.msra.mxu0 %v1146
      %1252 = vmatpush.bf16.msra.mxu0 %v1145
      %1253 = vmatpush.bf16.msra.mxu0 %v1144
      %1254 = vmatpush.bf16.msra.mxu0 %v1143
      %1255 = vmatpush.bf16.msra.mxu0 %v1142
      %1256 = vmatpush.bf16.msra.mxu0 %v1141
      %1257 = vmatpush.bf16.msra.mxu0 %v1140
      %1258 = vmatpush.bf16.msra.mxu0 %v1139
      %1259 = vmatmul.bf16.gmra.mxu0 %v1219
      %v1260 = vpop.f32.mrf.mxu0
      %v1261 = vadd.f32 0.0, %v1260
      %v1262 = vpop.f32.mrf.mxu0
      %v1263 = vadd.f32 0.0, %v1262
      %1264 = vmatmul.bf16.gmra.mxu0 %v1221
      %v1265 = vpop.f32.mrf.mxu0
      %v1266 = vadd.f32 0.0, %v1265
      %v1267 = vpop.f32.mrf.mxu0
      %v1268 = vadd.f32 0.0, %v1267
      %1269 = vmatmul.bf16.gmra.mxu0 %v1223
      %v1270 = vpop.f32.mrf.mxu0
      %v1271 = vadd.f32 0.0, %v1270
      %v1272 = vpop.f32.mrf.mxu0
      %v1273 = vadd.f32 0.0, %v1272
      %1274 = vmatmul.bf16.gmra.mxu0 %v1225
      %v1275 = vpop.f32.mrf.mxu0
      %v1276 = vadd.f32 0.0, %v1275
      %v1277 = vpop.f32.mrf.mxu0
      %v1278 = vadd.f32 0.0, %v1277
      %1279 = vmatmul.bf16.gmra.mxu0 %v1227
      %v1280 = vpop.f32.mrf.mxu0
      %v1281 = vadd.f32 0.0, %v1280
      %v1282 = vpop.f32.mrf.mxu0
      %v1283 = vadd.f32 0.0, %v1282
      %1284 = vmatmul.bf16.gmra.mxu0 %v1229
      %v1285 = vpop.f32.mrf.mxu0
      %v1286 = vadd.f32 0.0, %v1285
      %v1287 = vpop.f32.mrf.mxu0
      %v1288 = vadd.f32 0.0, %v1287
      %1289 = vmatmul.bf16.gmra.mxu0 %v1231
      %v1290 = vpop.f32.mrf.mxu0
      %v1291 = vadd.f32 0.0, %v1290
      %v1292 = vpop.f32.mrf.mxu0
      %v1293 = vadd.f32 0.0, %v1292
      %1294 = vmatmul.bf16.gmra.mxu0 %v1233
      %v1295 = vpop.f32.mrf.mxu0
      %v1296 = vadd.f32 0.0, %v1295
      %v1297 = vpop.f32.mrf.mxu0
      %v1298 = vadd.f32 0.0, %v1297
      %1299 = vdwg.mxu0
      %1300 = vmatpush.bf16.msra.mxu0 %v1154
      %1301 = vmatpush.bf16.msra.mxu0 %v1153
      %1302 = vmatpush.bf16.msra.mxu0 %v1152
      %1303 = vmatpush.bf16.msra.mxu0 %v1151
      %1304 = vmatpush.bf16.msra.mxu0 %v1150
      %1305 = vmatpush.bf16.msra.mxu0 %v1149
      %1306 = vmatpush.bf16.msra.mxu0 %v1148
      %1307 = vmatpush.bf16.msra.mxu0 %v1147
      %1308 = vmatmul.bf16.gmra.mxu0 %v1220
      %v1309 = vpop.f32.mrf.mxu0
      %v1310 = vadd.f32 %v1261, %v1309
      %v1311 = vpop.f32.mrf.mxu0
      %v1312 = vadd.f32 %v1263, %v1311
      %1313 = vmatmul.bf16.gmra.mxu0 %v1222
      %v1314 = vpop.f32.mrf.mxu0
      %v1315 = vadd.f32 %v1266, %v1314
      %v1316 = vpop.f32.mrf.mxu0
      %v1317 = vadd.f32 %v1268, %v1316
      %1318 = vmatmul.bf16.gmra.mxu0 %v1224
      %v1319 = vpop.f32.mrf.mxu0
      %v1320 = vadd.f32 %v1271, %v1319
      %v1321 = vpop.f32.mrf.mxu0
      %v1322 = vadd.f32 %v1273, %v1321
      %1323 = vmatmul.bf16.gmra.mxu0 %v1226
      %v1324 = vpop.f32.mrf.mxu0
      %v1325 = vadd.f32 %v1276, %v1324
      %v1326 = vpop.f32.mrf.mxu0
      %v1327 = vadd.f32 %v1278, %v1326
      %1328 = vmatmul.bf16.gmra.mxu0 %v1228
      %v1329 = vpop.f32.mrf.mxu0
      %v1330 = vadd.f32 %v1281, %v1329
      %v1331 = vpop.f32.mrf.mxu0
      %v1332 = vadd.f32 %v1283, %v1331
      %1333 = vmatmul.bf16.gmra.mxu0 %v1230
      %v1334 = vpop.f32.mrf.mxu0
      %v1335 = vadd.f32 %v1286, %v1334
      %v1336 = vpop.f32.mrf.mxu0
      %v1337 = vadd.f32 %v1288, %v1336
      %1338 = vmatmul.bf16.gmra.mxu0 %v1232
      %v1339 = vpop.f32.mrf.mxu0
      %v1340 = vadd.f32 %v1291, %v1339
      %v1341 = vpop.f32.mrf.mxu0
      %v1342 = vadd.f32 %v1293, %v1341
      %1343 = vmatmul.bf16.gmra.mxu0 %v1234
      %v1344 = vpop.f32.mrf.mxu0
      %v1345 = vadd.f32 %v1296, %v1344
      %v1346 = vpop.f32.mrf.mxu0
      %v1347 = vadd.f32 %v1298, %v1346
      %1348 = vdwg.mxu0
      %vm1349 = vcmask 523264
      %v1350 = vsel %vm1349, %v1310, 0.0
      %1351 = vadd.xlane.f32.xlu0 %v1350
      %v1352 = vpop.xlane.xlu0 %1351
      %v1353 = vsel %vm1349, %v1312, 0.0
      %1354 = vadd.xlane.f32.xlu0 %v1353
      %v1355 = vpop.xlane.xlu0 %1354
      %v1356 = vsel %vm1349, %v1315, 0.0
      %1357 = vadd.xlane.f32.xlu0 %v1356
      %v1358 = vpop.xlane.xlu0 %1357
      %v1359 = vsel %vm1349, %v1317, 0.0
      %1360 = vadd.xlane.f32.xlu0 %v1359
      %v1361 = vpop.xlane.xlu0 %1360
      %v1362 = vsel %vm1349, %v1320, 0.0
      %1363 = vadd.xlane.f32.xlu0 %v1362
      %v1364 = vpop.xlane.xlu0 %1363
      %v1365 = vsel %vm1349, %v1322, 0.0
      %1366 = vadd.xlane.f32.xlu0 %v1365
      %v1367 = vpop.xlane.xlu0 %1366
      %v1368 = vsel %vm1349, %v1325, 0.0
      %1369 = vadd.xlane.f32.xlu0 %v1368
      %v1370 = vpop.xlane.xlu0 %1369
      %v1371 = vsel %vm1349, %v1327, 0.0
      %1372 = vadd.xlane.f32.xlu0 %v1371
      %v1373 = vpop.xlane.xlu0 %1372
      %v1374 = vsel %vm1349, %v1330, 0.0
      %1375 = vadd.xlane.f32.xlu0 %v1374
      %v1376 = vpop.xlane.xlu0 %1375
      %v1377 = vsel %vm1349, %v1332, 0.0
      %1378 = vadd.xlane.f32.xlu0 %v1377
      %v1379 = vpop.xlane.xlu0 %1378
      %v1380 = vsel %vm1349, %v1335, 0.0
      %1381 = vadd.xlane.f32.xlu0 %v1380
      %v1382 = vpop.xlane.xlu0 %1381
      %v1383 = vsel %vm1349, %v1337, 0.0
      %1384 = vadd.xlane.f32.xlu0 %v1383
      %v1385 = vpop.xlane.xlu0 %1384
      %v1386 = vsel %vm1349, %v1340, 0.0
      %1387 = vadd.xlane.f32.xlu0 %v1386
      %v1388 = vpop.xlane.xlu0 %1387
      %v1389 = vsel %vm1349, %v1342, 0.0
      %1390 = vadd.xlane.f32.xlu0 %v1389
      %v1391 = vpop.xlane.xlu0 %1390
      %v1392 = vsel %vm1349, %v1345, 0.0
      %1393 = vadd.xlane.f32.xlu0 %v1392
      %v1394 = vpop.xlane.xlu0 %1393
      %v1395 = vsel %vm1349, %v1347, 0.0
      %1396 = vadd.xlane.f32.xlu0 %v1395
      %v1397 = vpop.xlane.xlu0 %1396
      %v1398 = vmul.f32 %v1310, %v1310
      %v1399 = vmul.f32 %v1312, %v1312
      %v1400 = vmul.f32 %v1315, %v1315
      %v1401 = vmul.f32 %v1317, %v1317
      %v1402 = vmul.f32 %v1320, %v1320
      %v1403 = vmul.f32 %v1322, %v1322
      %v1404 = vmul.f32 %v1325, %v1325
      %v1405 = vmul.f32 %v1327, %v1327
      %v1406 = vmul.f32 %v1330, %v1330
      %v1407 = vmul.f32 %v1332, %v1332
      %v1408 = vmul.f32 %v1335, %v1335
      %v1409 = vmul.f32 %v1337, %v1337
      %v1410 = vmul.f32 %v1340, %v1340
      %v1411 = vmul.f32 %v1342, %v1342
      %v1412 = vmul.f32 %v1345, %v1345
      %v1413 = vmul.f32 %v1347, %v1347
      %v1414 = vsel %vm1349, %v1398, 0.0
      %1415 = vadd.xlane.f32.xlu0 %v1414
      %v1416 = vpop.xlane.xlu0 %1415
      %v1417 = vsel %vm1349, %v1399, 0.0
      %1418 = vadd.xlane.f32.xlu0 %v1417
      %v1419 = vpop.xlane.xlu0 %1418
      %v1420 = vsel %vm1349, %v1400, 0.0
      %1421 = vadd.xlane.f32.xlu0 %v1420
      %v1422 = vpop.xlane.xlu0 %1421
      %v1423 = vsel %vm1349, %v1401, 0.0
      %1424 = vadd.xlane.f32.xlu0 %v1423
      %v1425 = vpop.xlane.xlu0 %1424
      %v1426 = vsel %vm1349, %v1402, 0.0
      %1427 = vadd.xlane.f32.xlu0 %v1426
      %v1428 = vpop.xlane.xlu0 %1427
      %v1429 = vsel %vm1349, %v1403, 0.0
      %1430 = vadd.xlane.f32.xlu0 %v1429
      %v1431 = vpop.xlane.xlu0 %1430
      %v1432 = vsel %vm1349, %v1404, 0.0
      %1433 = vadd.xlane.f32.xlu0 %v1432
      %v1434 = vpop.xlane.xlu0 %1433
      %v1435 = vsel %vm1349, %v1405, 0.0
      %1436 = vadd.xlane.f32.xlu0 %v1435
      %v1437 = vpop.xlane.xlu0 %1436
      %v1438 = vsel %vm1349, %v1406, 0.0
      %1439 = vadd.xlane.f32.xlu0 %v1438
      %v1440 = vpop.xlane.xlu0 %1439
      %v1441 = vsel %vm1349, %v1407, 0.0
      %1442 = vadd.xlane.f32.xlu0 %v1441
      %v1443 = vpop.xlane.xlu0 %1442
      %v1444 = vsel %vm1349, %v1408, 0.0
      %1445 = vadd.xlane.f32.xlu0 %v1444
      %v1446 = vpop.xlane.xlu0 %1445
      %v1447 = vsel %vm1349, %v1409, 0.0
      %1448 = vadd.xlane.f32.xlu0 %v1447
      %v1449 = vpop.xlane.xlu0 %1448
      %v1450 = vsel %vm1349, %v1410, 0.0
      %1451 = vadd.xlane.f32.xlu0 %v1450
      %v1452 = vpop.xlane.xlu0 %1451
      %v1453 = vsel %vm1349, %v1411, 0.0
      %1454 = vadd.xlane.f32.xlu0 %v1453
      %v1455 = vpop.xlane.xlu0 %1454
      %v1456 = vsel %vm1349, %v1412, 0.0
      %1457 = vadd.xlane.f32.xlu0 %v1456
      %v1458 = vpop.xlane.xlu0 %1457
      %v1459 = vsel %vm1349, %v1413, 0.0
      %1460 = vadd.xlane.f32.xlu0 %v1459
      %v1461 = vpop.xlane.xlu0 %1460
      %v1462 = vmul.f32 %v1352, 0.015625
      %v1463 = vmul.f32 %v1355, 0.015625
      %v1464 = vmul.f32 %v1358, 0.015625
      %v1465 = vmul.f32 %v1361, 0.015625
      %v1466 = vmul.f32 %v1364, 0.015625
      %v1467 = vmul.f32 %v1367, 0.015625
      %v1468 = vmul.f32 %v1370, 0.015625
      %v1469 = vmul.f32 %v1373, 0.015625
      %v1470 = vmul.f32 %v1376, 0.015625
      %v1471 = vmul.f32 %v1379, 0.015625
      %v1472 = vmul.f32 %v1382, 0.015625
      %v1473 = vmul.f32 %v1385, 0.015625
      %v1474 = vmul.f32 %v1388, 0.015625
      %v1475 = vmul.f32 %v1391, 0.015625
      %v1476 = vmul.f32 %v1394, 0.015625
      %v1477 = vmul.f32 %v1397, 0.015625
      %v1478 = vmul.f32 %v1416, 0.015625
      %v1479 = vmul.f32 %v1419, 0.015625
      %v1480 = vmul.f32 %v1422, 0.015625
      %v1481 = vmul.f32 %v1425, 0.015625
      %v1482 = vmul.f32 %v1428, 0.015625
      %v1483 = vmul.f32 %v1431, 0.015625
      %v1484 = vmul.f32 %v1434, 0.015625
      %v1485 = vmul.f32 %v1437, 0.015625
      %v1486 = vmul.f32 %v1440, 0.015625
      %v1487 = vmul.f32 %v1443, 0.015625
      %v1488 = vmul.f32 %v1446, 0.015625
      %v1489 = vmul.f32 %v1449, 0.015625
      %v1490 = vmul.f32 %v1452, 0.015625
      %v1491 = vmul.f32 %v1455, 0.015625
      %v1492 = vmul.f32 %v1458, 0.015625
      %v1493 = vmul.f32 %v1461, 0.015625
      %v1494 = vmul.f32 %v1462, %v1462
      %v1495 = vmul.f32 %v1463, %v1463
      %v1496 = vmul.f32 %v1464, %v1464
      %v1497 = vmul.f32 %v1465, %v1465
      %v1498 = vmul.f32 %v1466, %v1466
      %v1499 = vmul.f32 %v1467, %v1467
      %v1500 = vmul.f32 %v1468, %v1468
      %v1501 = vmul.f32 %v1469, %v1469
      %v1502 = vmul.f32 %v1470, %v1470
      %v1503 = vmul.f32 %v1471, %v1471
      %v1504 = vmul.f32 %v1472, %v1472
      %v1505 = vmul.f32 %v1473, %v1473
      %v1506 = vmul.f32 %v1474, %v1474
      %v1507 = vmul.f32 %v1475, %v1475
      %v1508 = vmul.f32 %v1476, %v1476
      %v1509 = vmul.f32 %v1477, %v1477
      %v1510 = vsub.f32 %v1478, %v1494
      %v1511 = vsub.f32 %v1479, %v1495
      %v1512 = vsub.f32 %v1480, %v1496
      %v1513 = vsub.f32 %v1481, %v1497
      %v1514 = vsub.f32 %v1482, %v1498
      %v1515 = vsub.f32 %v1483, %v1499
      %v1516 = vsub.f32 %v1484, %v1500
      %v1517 = vsub.f32 %v1485, %v1501
      %v1518 = vsub.f32 %v1486, %v1502
      %v1519 = vsub.f32 %v1487, %v1503
      %v1520 = vsub.f32 %v1488, %v1504
      %v1521 = vsub.f32 %v1489, %v1505
      %v1522 = vsub.f32 %v1490, %v1506
      %v1523 = vsub.f32 %v1491, %v1507
      %v1524 = vsub.f32 %v1492, %v1508
      %v1525 = vsub.f32 %v1493, %v1509
      %v1526 = vmax.f32 %v1510, 0.0
      %v1527 = vmax.f32 %v1511, 0.0
      %v1528 = vmax.f32 %v1512, 0.0
      %v1529 = vmax.f32 %v1513, 0.0
      %v1530 = vmax.f32 %v1514, 0.0
      %v1531 = vmax.f32 %v1515, 0.0
      %v1532 = vmax.f32 %v1516, 0.0
      %v1533 = vmax.f32 %v1517, 0.0
      %v1534 = vmax.f32 %v1518, 0.0
      %v1535 = vmax.f32 %v1519, 0.0
      %v1536 = vmax.f32 %v1520, 0.0
      %v1537 = vmax.f32 %v1521, 0.0
      %v1538 = vmax.f32 %v1522, 0.0
      %v1539 = vmax.f32 %v1523, 0.0
      %v1540 = vmax.f32 %v1524, 0.0
      %v1541 = vmax.f32 %v1525, 0.0
      %v1542 = vadd.f32 %v1526, 1e-05
      %v1543 = vadd.f32 %v1527, 1e-05
      %v1544 = vadd.f32 %v1528, 1e-05
      %v1545 = vadd.f32 %v1529, 1e-05
      %v1546 = vadd.f32 %v1530, 1e-05
      %v1547 = vadd.f32 %v1531, 1e-05
      %v1548 = vadd.f32 %v1532, 1e-05
      %v1549 = vadd.f32 %v1533, 1e-05
      %v1550 = vadd.f32 %v1534, 1e-05
      %v1551 = vadd.f32 %v1535, 1e-05
      %v1552 = vadd.f32 %v1536, 1e-05
      %v1553 = vadd.f32 %v1537, 1e-05
      %v1554 = vadd.f32 %v1538, 1e-05
      %v1555 = vadd.f32 %v1539, 1e-05
      %v1556 = vadd.f32 %v1540, 1e-05
      %v1557 = vadd.f32 %v1541, 1e-05
      %v1558 = vrsqrt.pop %v1542
      %v1559 = vmul.f32 %v1558, %v1542
      %v1560 = vmul.f32 %v1559, %v1558
      %v1561 = vmul.f32 0.5, %v1560
      %v1562 = vsub.f32 1.5, %v1561
      %v1563 = vmul.f32 %v1558, %v1562
      %vm1564 = vweird.f32 %v1542
      %vm1565 = vweird.f32 %v1558
      %vm1566 = vmor %vm1564, %vm1565
      %v1567 = vsel %vm1566, %v1558, %v1563
      %v1568 = vrsqrt.pop %v1543
      %v1569 = vmul.f32 %v1568, %v1543
      %v1570 = vmul.f32 %v1569, %v1568
      %v1571 = vmul.f32 0.5, %v1570
      %v1572 = vsub.f32 1.5, %v1571
      %v1573 = vmul.f32 %v1568, %v1572
      %vm1574 = vweird.f32 %v1543
      %vm1575 = vweird.f32 %v1568
      %vm1576 = vmor %vm1574, %vm1575
      %v1577 = vsel %vm1576, %v1568, %v1573
      %v1578 = vrsqrt.pop %v1544
      %v1579 = vmul.f32 %v1578, %v1544
      %v1580 = vmul.f32 %v1579, %v1578
      %v1581 = vmul.f32 0.5, %v1580
      %v1582 = vsub.f32 1.5, %v1581
      %v1583 = vmul.f32 %v1578, %v1582
      %vm1584 = vweird.f32 %v1544
      %vm1585 = vweird.f32 %v1578
      %vm1586 = vmor %vm1584, %vm1585
      %v1587 = vsel %vm1586, %v1578, %v1583
      %v1588 = vrsqrt.pop %v1545
      %v1589 = vmul.f32 %v1588, %v1545
      %v1590 = vmul.f32 %v1589, %v1588
      %v1591 = vmul.f32 0.5, %v1590
      %v1592 = vsub.f32 1.5, %v1591
      %v1593 = vmul.f32 %v1588, %v1592
      %vm1594 = vweird.f32 %v1545
      %vm1595 = vweird.f32 %v1588
      %vm1596 = vmor %vm1594, %vm1595
      %v1597 = vsel %vm1596, %v1588, %v1593
      %v1598 = vrsqrt.pop %v1546
      %v1599 = vmul.f32 %v1598, %v1546
      %v1600 = vmul.f32 %v1599, %v1598
      %v1601 = vmul.f32 0.5, %v1600
      %v1602 = vsub.f32 1.5, %v1601
      %v1603 = vmul.f32 %v1598, %v1602
      %vm1604 = vweird.f32 %v1546
      %vm1605 = vweird.f32 %v1598
      %vm1606 = vmor %vm1604, %vm1605
      %v1607 = vsel %vm1606, %v1598, %v1603
      %v1608 = vrsqrt.pop %v1547
      %v1609 = vmul.f32 %v1608, %v1547
      %v1610 = vmul.f32 %v1609, %v1608
      %v1611 = vmul.f32 0.5, %v1610
      %v1612 = vsub.f32 1.5, %v1611
      %v1613 = vmul.f32 %v1608, %v1612
      %vm1614 = vweird.f32 %v1547
      %vm1615 = vweird.f32 %v1608
      %vm1616 = vmor %vm1614, %vm1615
      %v1617 = vsel %vm1616, %v1608, %v1613
      %v1618 = vrsqrt.pop %v1548
      %v1619 = vmul.f32 %v1618, %v1548
      %v1620 = vmul.f32 %v1619, %v1618
      %v1621 = vmul.f32 0.5, %v1620
      %v1622 = vsub.f32 1.5, %v1621
      %v1623 = vmul.f32 %v1618, %v1622
      %vm1624 = vweird.f32 %v1548
      %vm1625 = vweird.f32 %v1618
      %vm1626 = vmor %vm1624, %vm1625
      %v1627 = vsel %vm1626, %v1618, %v1623
      %v1628 = vrsqrt.pop %v1549
      %v1629 = vmul.f32 %v1628, %v1549
      %v1630 = vmul.f32 %v1629, %v1628
      %v1631 = vmul.f32 0.5, %v1630
      %v1632 = vsub.f32 1.5, %v1631
      %v1633 = vmul.f32 %v1628, %v1632
      %vm1634 = vweird.f32 %v1549
      %vm1635 = vweird.f32 %v1628
      %vm1636 = vmor %vm1634, %vm1635
      %v1637 = vsel %vm1636, %v1628, %v1633
      %v1638 = vrsqrt.pop %v1550
      %v1639 = vmul.f32 %v1638, %v1550
      %v1640 = vmul.f32 %v1639, %v1638
      %v1641 = vmul.f32 0.5, %v1640
      %v1642 = vsub.f32 1.5, %v1641
      %v1643 = vmul.f32 %v1638, %v1642
      %vm1644 = vweird.f32 %v1550
      %vm1645 = vweird.f32 %v1638
      %vm1646 = vmor %vm1644, %vm1645
      %v1647 = vsel %vm1646, %v1638, %v1643
      %v1648 = vrsqrt.pop %v1551
      %v1649 = vmul.f32 %v1648, %v1551
      %v1650 = vmul.f32 %v1649, %v1648
      %v1651 = vmul.f32 0.5, %v1650
      %v1652 = vsub.f32 1.5, %v1651
      %v1653 = vmul.f32 %v1648, %v1652
      %vm1654 = vweird.f32 %v1551
      %vm1655 = vweird.f32 %v1648
      %vm1656 = vmor %vm1654, %vm1655
      %v1657 = vsel %vm1656, %v1648, %v1653
      %v1658 = vrsqrt.pop %v1552
      %v1659 = vmul.f32 %v1658, %v1552
      %v1660 = vmul.f32 %v1659, %v1658
      %v1661 = vmul.f32 0.5, %v1660
      %v1662 = vsub.f32 1.5, %v1661
      %v1663 = vmul.f32 %v1658, %v1662
      %vm1664 = vweird.f32 %v1552
      %vm1665 = vweird.f32 %v1658
      %vm1666 = vmor %vm1664, %vm1665
      %v1667 = vsel %vm1666, %v1658, %v1663
      %v1668 = vrsqrt.pop %v1553
      %v1669 = vmul.f32 %v1668, %v1553
      %v1670 = vmul.f32 %v1669, %v1668
      %v1671 = vmul.f32 0.5, %v1670
      %v1672 = vsub.f32 1.5, %v1671
      %v1673 = vmul.f32 %v1668, %v1672
      %vm1674 = vweird.f32 %v1553
      %vm1675 = vweird.f32 %v1668
      %vm1676 = vmor %vm1674, %vm1675
      %v1677 = vsel %vm1676, %v1668, %v1673
      %v1678 = vrsqrt.pop %v1554
      %v1679 = vmul.f32 %v1678, %v1554
      %v1680 = vmul.f32 %v1679, %v1678
      %v1681 = vmul.f32 0.5, %v1680
      %v1682 = vsub.f32 1.5, %v1681
      %v1683 = vmul.f32 %v1678, %v1682
      %vm1684 = vweird.f32 %v1554
      %vm1685 = vweird.f32 %v1678
      %vm1686 = vmor %vm1684, %vm1685
      %v1687 = vsel %vm1686, %v1678, %v1683
      %v1688 = vrsqrt.pop %v1555
      %v1689 = vmul.f32 %v1688, %v1555
      %v1690 = vmul.f32 %v1689, %v1688
      %v1691 = vmul.f32 0.5, %v1690
      %v1692 = vsub.f32 1.5, %v1691
      %v1693 = vmul.f32 %v1688, %v1692
      %vm1694 = vweird.f32 %v1555
      %vm1695 = vweird.f32 %v1688
      %vm1696 = vmor %vm1694, %vm1695
      %v1697 = vsel %vm1696, %v1688, %v1693
      %v1698 = vrsqrt.pop %v1556
      %v1699 = vmul.f32 %v1698, %v1556
      %v1700 = vmul.f32 %v1699, %v1698
      %v1701 = vmul.f32 0.5, %v1700
      %v1702 = vsub.f32 1.5, %v1701
      %v1703 = vmul.f32 %v1698, %v1702
      %vm1704 = vweird.f32 %v1556
      %vm1705 = vweird.f32 %v1698
      %vm1706 = vmor %vm1704, %vm1705
      %v1707 = vsel %vm1706, %v1698, %v1703
      %v1708 = vrsqrt.pop %v1557
      %v1709 = vmul.f32 %v1708, %v1557
      %v1710 = vmul.f32 %v1709, %v1708
      %v1711 = vmul.f32 0.5, %v1710
      %v1712 = vsub.f32 1.5, %v1711
      %v1713 = vmul.f32 %v1708, %v1712
      %vm1714 = vweird.f32 %v1557
      %vm1715 = vweird.f32 %v1708
      %vm1716 = vmor %vm1714, %vm1715
      %v1717 = vsel %vm1716, %v1708, %v1713
      %v1718 = vld [vmem:[%s261] sm:$0xff]
      %v1719 = vld [vmem:[%s261 + $0x8] sm:$0xff]
      %v1720 = vld [vmem:[%s261 + $0x10] sm:$0xff]
      %v1721 = vld [vmem:[%s261 + $0x18] sm:$0xff]
      %v1722 = vld [vmem:[%s261 + $0x20] sm:$0xff]
      %v1723 = vld [vmem:[%s261 + $0x28] sm:$0xff]
      %v1724 = vld [vmem:[%s261 + $0x30] sm:$0xff]
      %v1725 = vld [vmem:[%s261 + $0x38] sm:$0xff]
      %v1726 = vld [vmem:[%s261 + $0x40] sm:$0xff]
      %v1727 = vld [vmem:[%s261 + $0x48] sm:$0xff]
      %v1728 = vld [vmem:[%s261 + $0x50] sm:$0xff]
      %v1729 = vld [vmem:[%s261 + $0x58] sm:$0xff]
      %v1730 = vld [vmem:[%s261 + $0x60] sm:$0xff]
      %v1731 = vld [vmem:[%s261 + $0x68] sm:$0xff]
      %v1732 = vld [vmem:[%s261 + $0x70] sm:$0xff]
      %v1733 = vld [vmem:[%s261 + $0x78] sm:$0xff]
      %v1734 = vmul.f32 %v1567, %v1718
      %v1735 = vmul.f32 %v1577, %v1719
      %v1736 = vmul.f32 %v1587, %v1720
      %v1737 = vmul.f32 %v1597, %v1721
      %v1738 = vmul.f32 %v1607, %v1722
      %v1739 = vmul.f32 %v1617, %v1723
      %v1740 = vmul.f32 %v1627, %v1724
      %v1741 = vmul.f32 %v1637, %v1725
      %v1742 = vmul.f32 %v1647, %v1726
      %v1743 = vmul.f32 %v1657, %v1727
      %v1744 = vmul.f32 %v1667, %v1728
      %v1745 = vmul.f32 %v1677, %v1729
      %v1746 = vmul.f32 %v1687, %v1730
      %v1747 = vmul.f32 %v1697, %v1731
      %v1748 = vmul.f32 %v1707, %v1732
      %v1749 = vmul.f32 %v1717, %v1733
      %v1750 = vld [vmem:[%s267] sm:$0xff]
      %v1751 = vld [vmem:[%s267 + $0x8] sm:$0xff]
      %v1752 = vld [vmem:[%s267 + $0x10] sm:$0xff]
      %v1753 = vld [vmem:[%s267 + $0x18] sm:$0xff]
      %v1754 = vld [vmem:[%s267 + $0x20] sm:$0xff]
      %v1755 = vld [vmem:[%s267 + $0x28] sm:$0xff]
      %v1756 = vld [vmem:[%s267 + $0x30] sm:$0xff]
      %v1757 = vld [vmem:[%s267 + $0x38] sm:$0xff]
      %v1758 = vld [vmem:[%s267 + $0x40] sm:$0xff]
      %v1759 = vld [vmem:[%s267 + $0x48] sm:$0xff]
      %v1760 = vld [vmem:[%s267 + $0x50] sm:$0xff]
      %v1761 = vld [vmem:[%s267 + $0x58] sm:$0xff]
      %v1762 = vld [vmem:[%s267 + $0x60] sm:$0xff]
      %v1763 = vld [vmem:[%s267 + $0x68] sm:$0xff]
      %v1764 = vld [vmem:[%s267 + $0x70] sm:$0xff]
      %v1765 = vld [vmem:[%s267 + $0x78] sm:$0xff]
      %v1766 = vmul.f32 %v1462, %v1734
      %v1767 = vmul.f32 %v1463, %v1735
      %v1768 = vmul.f32 %v1464, %v1736
      %v1769 = vmul.f32 %v1465, %v1737
      %v1770 = vmul.f32 %v1466, %v1738
      %v1771 = vmul.f32 %v1467, %v1739
      %v1772 = vmul.f32 %v1468, %v1740
      %v1773 = vmul.f32 %v1469, %v1741
      %v1774 = vmul.f32 %v1470, %v1742
      %v1775 = vmul.f32 %v1471, %v1743
      %v1776 = vmul.f32 %v1472, %v1744
      %v1777 = vmul.f32 %v1473, %v1745
      %v1778 = vmul.f32 %v1474, %v1746
      %v1779 = vmul.f32 %v1475, %v1747
      %v1780 = vmul.f32 %v1476, %v1748
      %v1781 = vmul.f32 %v1477, %v1749
      %v1782 = vsub.f32 %v1750, %v1766
      %v1783 = vsub.f32 %v1751, %v1767
      %v1784 = vsub.f32 %v1752, %v1768
      %v1785 = vsub.f32 %v1753, %v1769
      %v1786 = vsub.f32 %v1754, %v1770
      %v1787 = vsub.f32 %v1755, %v1771
      %v1788 = vsub.f32 %v1756, %v1772
      %v1789 = vsub.f32 %v1757, %v1773
      %v1790 = vsub.f32 %v1758, %v1774
      %v1791 = vsub.f32 %v1759, %v1775
      %v1792 = vsub.f32 %v1760, %v1776
      %v1793 = vsub.f32 %v1761, %v1777
      %v1794 = vsub.f32 %v1762, %v1778
      %v1795 = vsub.f32 %v1763, %v1779
      %v1796 = vsub.f32 %v1764, %v1780
      %v1797 = vsub.f32 %v1765, %v1781
      %1799 = vset.pattern.permute.xlu0 0
      %1800 = vperm.xlu0 %1799, %v1734
      %v1801 = vpop.permute.xlu0 %1800
      %1804 = vset.pattern.permute.xlu0 0
      %1805 = vperm.xlu0 %1804, %v1735
      %v1806 = vpop.permute.xlu0 %1805
      %1809 = vset.pattern.permute.xlu0 0
      %1810 = vperm.xlu0 %1809, %v1736
      %v1811 = vpop.permute.xlu0 %1810
      %1814 = vset.pattern.permute.xlu0 0
      %1815 = vperm.xlu0 %1814, %v1737
      %v1816 = vpop.permute.xlu0 %1815
      %1819 = vset.pattern.permute.xlu0 0
      %1820 = vperm.xlu0 %1819, %v1738
      %v1821 = vpop.permute.xlu0 %1820
      %1824 = vset.pattern.permute.xlu0 0
      %1825 = vperm.xlu0 %1824, %v1739
      %v1826 = vpop.permute.xlu0 %1825
      %1829 = vset.pattern.permute.xlu0 0
      %1830 = vperm.xlu0 %1829, %v1740
      %v1831 = vpop.permute.xlu0 %1830
      %1834 = vset.pattern.permute.xlu0 0
      %1835 = vperm.xlu0 %1834, %v1741
      %v1836 = vpop.permute.xlu0 %1835
      %1839 = vset.pattern.permute.xlu0 0
      %1840 = vperm.xlu0 %1839, %v1742
      %v1841 = vpop.permute.xlu0 %1840
      %1844 = vset.pattern.permute.xlu0 0
      %1845 = vperm.xlu0 %1844, %v1743
      %v1846 = vpop.permute.xlu0 %1845
      %1849 = vset.pattern.permute.xlu0 0
      %1850 = vperm.xlu0 %1849, %v1744
      %v1851 = vpop.permute.xlu0 %1850
      %1854 = vset.pattern.permute.xlu0 0
      %1855 = vperm.xlu0 %1854, %v1745
      %v1856 = vpop.permute.xlu0 %1855
      %1859 = vset.pattern.permute.xlu0 0
      %1860 = vperm.xlu0 %1859, %v1746
      %v1861 = vpop.permute.xlu0 %1860
      %1864 = vset.pattern.permute.xlu0 0
      %1865 = vperm.xlu0 %1864, %v1747
      %v1866 = vpop.permute.xlu0 %1865
      %1869 = vset.pattern.permute.xlu0 0
      %1870 = vperm.xlu0 %1869, %v1748
      %v1871 = vpop.permute.xlu0 %1870
      %1874 = vset.pattern.permute.xlu0 0
      %1875 = vperm.xlu0 %1874, %v1749
      %v1876 = vpop.permute.xlu0 %1875
      %v1878 = vmul.f32 %v1310, %v1801
      %v1879 = vmul.f32 %v1312, %v1806
      %v1880 = vmul.f32 %v1315, %v1811
      %v1881 = vmul.f32 %v1317, %v1816
      %v1882 = vmul.f32 %v1320, %v1821
      %v1883 = vmul.f32 %v1322, %v1826
      %v1884 = vmul.f32 %v1325, %v1831
      %v1885 = vmul.f32 %v1327, %v1836
      %v1886 = vmul.f32 %v1330, %v1841
      %v1887 = vmul.f32 %v1332, %v1846
      %v1888 = vmul.f32 %v1335, %v1851
      %v1889 = vmul.f32 %v1337, %v1856
      %v1890 = vmul.f32 %v1340, %v1861
      %v1891 = vmul.f32 %v1342, %v1866
      %v1892 = vmul.f32 %v1345, %v1871
      %v1893 = vmul.f32 %v1347, %v1876
      %1895 = vset.pattern.permute.xlu0 0
      %1896 = vperm.xlu0 %1895, %v1782
      %v1897 = vpop.permute.xlu0 %1896
      %1900 = vset.pattern.permute.xlu0 0
      %1901 = vperm.xlu0 %1900, %v1783
      %v1902 = vpop.permute.xlu0 %1901
      %1905 = vset.pattern.permute.xlu0 0
      %1906 = vperm.xlu0 %1905, %v1784
      %v1907 = vpop.permute.xlu0 %1906
      %1910 = vset.pattern.permute.xlu0 0
      %1911 = vperm.xlu0 %1910, %v1785
      %v1912 = vpop.permute.xlu0 %1911
      %1915 = vset.pattern.permute.xlu0 0
      %1916 = vperm.xlu0 %1915, %v1786
      %v1917 = vpop.permute.xlu0 %1916
      %1920 = vset.pattern.permute.xlu0 0
      %1921 = vperm.xlu0 %1920, %v1787
      %v1922 = vpop.permute.xlu0 %1921
      %1925 = vset.pattern.permute.xlu0 0
      %1926 = vperm.xlu0 %1925, %v1788
      %v1927 = vpop.permute.xlu0 %1926
      %1930 = vset.pattern.permute.xlu0 0
      %1931 = vperm.xlu0 %1930, %v1789
      %v1932 = vpop.permute.xlu0 %1931
      %1935 = vset.pattern.permute.xlu0 0
      %1936 = vperm.xlu0 %1935, %v1790
      %v1937 = vpop.permute.xlu0 %1936
      %1940 = vset.pattern.permute.xlu0 0
      %1941 = vperm.xlu0 %1940, %v1791
      %v1942 = vpop.permute.xlu0 %1941
      %1945 = vset.pattern.permute.xlu0 0
      %1946 = vperm.xlu0 %1945, %v1792
      %v1947 = vpop.permute.xlu0 %1946
      %1950 = vset.pattern.permute.xlu0 0
      %1951 = vperm.xlu0 %1950, %v1793
      %v1952 = vpop.permute.xlu0 %1951
      %1955 = vset.pattern.permute.xlu0 0
      %1956 = vperm.xlu0 %1955, %v1794
      %v1957 = vpop.permute.xlu0 %1956
      %1960 = vset.pattern.permute.xlu0 0
      %1961 = vperm.xlu0 %1960, %v1795
      %v1962 = vpop.permute.xlu0 %1961
      %1965 = vset.pattern.permute.xlu0 0
      %1966 = vperm.xlu0 %1965, %v1796
      %v1967 = vpop.permute.xlu0 %1966
      %1970 = vset.pattern.permute.xlu0 0
      %1971 = vperm.xlu0 %1970, %v1797
      %v1972 = vpop.permute.xlu0 %1971
      %v1974 = vadd.f32 %v1878, %v1897
      %v1975 = vadd.f32 %v1879, %v1902
      %v1976 = vadd.f32 %v1880, %v1907
      %v1977 = vadd.f32 %v1881, %v1912
      %v1978 = vadd.f32 %v1882, %v1917
      %v1979 = vadd.f32 %v1883, %v1922
      %v1980 = vadd.f32 %v1884, %v1927
      %v1981 = vadd.f32 %v1885, %v1932
      %v1982 = vadd.f32 %v1886, %v1937
      %v1983 = vadd.f32 %v1887, %v1942
      %v1984 = vadd.f32 %v1888, %v1947
      %v1985 = vadd.f32 %v1889, %v1952
      %v1986 = vadd.f32 %v1890, %v1957
      %v1987 = vadd.f32 %v1891, %v1962
      %v1988 = vadd.f32 %v1892, %v1967
      %v1989 = vadd.f32 %v1893, %v1972
      %1990 = vst.msk [vmem:[%s273] sm:$0xff] %vm1349, %v1974
      %1991 = vst.msk [vmem:[%s273 + $0x8] sm:$0xff] %vm1349, %v1975
      %1992 = vst.msk [vmem:[%s273 + $0x10] sm:$0xff] %vm1349, %v1976
      %1993 = vst.msk [vmem:[%s273 + $0x18] sm:$0xff] %vm1349, %v1977
      %1994 = vst.msk [vmem:[%s273 + $0x20] sm:$0xff] %vm1349, %v1978
      %1995 = vst.msk [vmem:[%s273 + $0x28] sm:$0xff] %vm1349, %v1979
      %1996 = vst.msk [vmem:[%s273 + $0x30] sm:$0xff] %vm1349, %v1980
      %1997 = vst.msk [vmem:[%s273 + $0x38] sm:$0xff] %vm1349, %v1981
      %1998 = vst.msk [vmem:[%s273 + $0x40] sm:$0xff] %vm1349, %v1982
      %1999 = vst.msk [vmem:[%s273 + $0x48] sm:$0xff] %vm1349, %v1983
      %2000 = vst.msk [vmem:[%s273 + $0x50] sm:$0xff] %vm1349, %v1984
      %2001 = vst.msk [vmem:[%s273 + $0x58] sm:$0xff] %vm1349, %v1985
      %2002 = vst.msk [vmem:[%s273 + $0x60] sm:$0xff] %vm1349, %v1986
      %2003 = vst.msk [vmem:[%s273 + $0x68] sm:$0xff] %vm1349, %v1987
      %2004 = vst.msk [vmem:[%s273 + $0x70] sm:$0xff] %vm1349, %v1988
      %2005 = vst.msk [vmem:[%s273 + $0x78] sm:$0xff] %vm1349, %v1989
      %s2006 = smul.u32 16, %s16
      %p2007 = scmp.lt.s32.totalorder %s2006, 31
      %s2008 = scalar_select %p2007, %s2006, 31
      %s2009 = smul.addr %s2008, 8
      %s2010 = scalar_lea.vmem %s5, %s2009
      // Predicated region
      $region41: #{tpu_custom_call.1} parent=39 // pred_check
        %p2011 = pneg %p154
      $region42: #{tpu_custom_call.1} parent=39 // pred_check_branch
        %2013 = sbr.rel (%p2011) target = $region44
      $region43: #{tpu_custom_call.1} parent=39 // pred_region
        %s2014 = smul.u32 16, %s16
      $region44: #{tpu_custom_call.1} parent=39 // pred_fallthru
        _
    $region40: #{tpu_custom_call.1} parent=5 // pred_fallthru
      _
    %p2015 = scmp.le.s32.totalorder 2, %s11
    // Predicated region
    $region45: #{tpu_custom_call.1} parent=5 // pred_check
      %p2016 = pneg %p2015
    $region46: #{tpu_custom_call.1} parent=5 // pred_check_branch
      %2018 = sbr.rel (%p2016) target = $region48
    $region47: #{tpu_custom_call.1} parent=5 // pred_region
      %s2019 = ssub.s32 %s11, 2
      // Predicated region
      $region49: #{tpu_custom_call.1} parent=47 // pred_check
        %p2020 = pneg %p160
      $region50: #{tpu_custom_call.1} parent=47 // pred_check_branch
        %2022 = sbr.rel (%p2020) target = $region52
      $region51: #{tpu_custom_call.1} parent=47 // pred_region
        %s2023 = smul.u32 16, %s17
        %p2024 = scmp.lt.s32.totalorder %s2023, 31
        %s2025 = scalar_select %p2024, %s2023, 31
        %s2026 = smul.addr %s2025, 8
        %s2027 = scalar_lea.vmem %s5, %s2026
      $region52: #{tpu_custom_call.1} parent=47 // pred_fallthru
        _
    $region48: #{tpu_custom_call.1} parent=5 // pred_fallthru
      _
  $region6: #{tpu_custom_call.1} parent=0 // loop_footer
    %s15 = sadd.s32 1, %s11
  $region7: #{tpu_custom_call.1} parent=0 // loop_footer_branch
    %10 = sbr.rel target = $region3
  $region8: #{tpu_custom_call.1} parent=0 // loop_exit
    _

</llo_original>
